<compile_context>
chip_gen: v5e
topology: v5e:2x2
jax: 0.10.0
libtpu: 0.0.40
codegen_flags: <defaults>
</compile_context>

<pallas_src>
import math

import jax
import jax.numpy as jnp
from jax.experimental import pallas as pl
from jax.experimental.pallas import tpu as pltpu


_K = 3          # conv kernel size
_C_IN = 3
_C1 = 16
_C2 = 32
_NCLS = 3
_NCLS_PAD = 128  # lane-dense output width; wrapper slices back to _NCLS
_SUB = 16        # bf16 sublane tile


def _round_up(x, m):
    return (x + m - 1) // m * m


def _geometry(H, W):
    """Static geometry: all row extents / offsets in the flattened (row = h*W + w) space.

    Every stage computes a contiguous block of "anchor" rows that is a superset of the
    semantically valid positions (valid anchors sit at stride 1 / 2 / 4 in the same row
    space).  Only valid anchors are ever read by the next stage, so the extra rows are
    finite garbage that is simply never used.  This removes all strided selection from
    the kernel: the final fc gather of n_pos anchor rows is the only "selection" left.
    """
    OH1, OW1 = H - (_K - 1), W - (_K - 1)
    PH1, PW1 = OH1 // 2, OW1 // 2
    OH2, OW2 = PH1 - (_K - 1), PW1 - (_K - 1)
    PH2, PW2 = OH2 // 2, OW2 // 2
    n_pos = PH2 * PW2
    assert n_pos >= 1, "image too small for this CNN"

    anchors_fc = [4 * (ph * W + pw) for ph in range(PH2) for pw in range(PW2)]
    A3 = anchors_fc[-1] + 1                                  # pool2 rows kept
    offs_p2 = [0, 2, 2 * W, 2 * W + 2]                       # pool2 sources (stride-2 grid)
    A2 = _round_up(A3 + offs_p2[-1], _SUB)                   # conv2 anchor rows computed
    offs_c2 = [2 * (kh * W + kw) for kh in range(_K) for kw in range(_K)]
    AU1 = A2 + offs_c2[-1]                                   # pool1 rows computed
    offs_p1 = [0, 1, W, W + 1]                               # pool1 sources (stride-1 grid)
    A1 = _round_up(AU1 + offs_p1[-1], _SUB)                  # conv1 anchor rows computed
    offs_c1 = [kh * W + kw for kh in range(_K) for kw in range(_K)]
    rows_in = _round_up(max(H * W, A1 + offs_c1[-1]), _SUB)  # padded input rows
    return dict(n_pos=n_pos, anchors_fc=anchors_fc,
                A1=A1, A2=A2, A3=A3, AU1=AU1,
                offs_c1=offs_c1, offs_p1=offs_p1, offs_c2=offs_c2, offs_p2=offs_p2,
                rows_in=rows_in)


def _make_kernel(BT, geo):
    A1, A2, A3, AU1 = geo["A1"], geo["A2"], geo["A3"], geo["AU1"]
    offs_c1, offs_p1 = geo["offs_c1"], geo["offs_p1"]
    offs_c2, offs_p2 = geo["offs_c2"], geo["offs_p2"]
    anchors_fc = geo["anchors_fc"]

    def kernel(x_ref, w1_ref, b1_ref, w2_ref, b2_ref, wfc_ref, bfc_ref, o_ref):
        # ---- conv1: 3x3 patches via 9 shifted row slices -> ONE tall MXU matmul -----
        p1 = jnp.concatenate(
            [x_ref[:, pl.ds(o, A1), :] for o in offs_c1], axis=-1)      # (BT, A1, 27) bf16
        y1 = jnp.dot(p1.reshape(BT * A1, _K * _K * _C_IN), w1_ref[...],
                     preferred_element_type=jnp.float32)                # (BT*A1, 16) f32
        y1 = jnp.maximum(y1 + b1_ref[...], 0.0).reshape(BT, A1, _C1)

        # ---- pool1 (VPU): elementwise max over 4 row-offset slices -------------------
        u1 = jnp.maximum(
            jnp.maximum(y1[:, offs_p1[0]:offs_p1[0] + AU1, :],
                        y1[:, offs_p1[1]:offs_p1[1] + AU1, :]),
            jnp.maximum(y1[:, offs_p1[2]:offs_p1[2] + AU1, :],
                        y1[:, offs_p1[3]:offs_p1[3] + AU1, :]),
        ).astype(jnp.bfloat16)                                          # (BT, AU1, 16)

        # ---- conv2: stride-2 patches of the pooled grid -> ONE MXU matmul ------------
        p2 = jnp.concatenate(
            [u1[:, o:o + A2, :] for o in offs_c2], axis=-1)             # (BT, A2, 144) bf16
        y2 = jnp.dot(p2.reshape(BT * A2, _K * _K * _C1), w2_ref[...],
                     preferred_element_type=jnp.float32)                # (BT*A2, 32) f32
        y2 = jnp.maximum(y2 + b2_ref[...], 0.0).reshape(BT, A2, _C2)

        # ---- pool2 (VPU) --------------------------------------------------------------
        u2 = jnp.maximum(
            jnp.maximum(y2[:, offs_p2[0]:offs_p2[0] + A3, :],
                        y2[:, offs_p2[1]:offs_p2[1] + A3, :]),
            jnp.maximum(y2[:, offs_p2[2]:offs_p2[2] + A3, :],
                        y2[:, offs_p2[3]:offs_p2[3] + A3, :]),
        ).astype(jnp.bfloat16)                                          # (BT, A3, 32)

        # ---- flatten: gather the n_pos valid anchors onto lanes; ONE fc matmul -------
        feat = jnp.concatenate([u2[:, a, :] for a in anchors_fc], axis=-1)  # (BT, n_pos*32)
        logits = jnp.dot(feat, wfc_ref[...],
                         preferred_element_type=jnp.float32) + bfc_ref[...]  # (BT, 128)
        o_ref[...] = logits[:, None, :]                                 # lane-dense store

    return kernel


@jax.jit
def cnn_forward(params, x_nchw):
    B, C_in, H, W = x_nchw.shape
    assert C_in == _C_IN
    geo = _geometry(H, W)
    n_pos, rows_in = geo["n_pos"], geo["rows_in"]

    # Batch tile: amortize per-step overhead; cap unrolled code size; keep grid >= 2 so
    # v7x megacore ("parallel") can still split the batch across both TensorCores.
    BT = min(16, B)
    if B >= 2 and -(-B // BT) < 2:
        BT = -(-B // 2)
    B_pad = -(-B // BT) * BT
    grid = B_pad // BT

    # ---- input: NCHW -> per-image flattened NHWC rows (row = h*W + w), bf16, padded ---
    x = jnp.transpose(x_nchw.astype(jnp.float32), (0, 2, 3, 1)).astype(jnp.bfloat16)
    x = x.reshape(B, H * W, _C_IN)
    x = jnp.pad(x, ((0, B_pad - B), (0, rows_in - H * W), (0, 0)))

    # ---- weights in kernel layout (patch lane order = (kh, kw, cin)); bf16 for MXU ----
    w1f = jnp.transpose(params["w1"], (2, 3, 1, 0)).reshape(_K * _K * _C_IN, _C1)
    w2f = jnp.transpose(params["w2"], (2, 3, 1, 0)).reshape(_K * _K * _C1, _C2)
    w1f, w2f = w1f.astype(jnp.bfloat16), w2f.astype(jnp.bfloat16)
    b1 = params["b1"].reshape(1, _C1).astype(jnp.float32)
    b2 = params["b2"].reshape(1, _C2).astype(jnp.float32)
    # torch flatten index = c*n_pos + p ; kernel feature lane = p*_C2 + c
    wfc = jnp.transpose(params["fc_w"].reshape(_NCLS, _C2, n_pos), (2, 1, 0))
    wfc = wfc.reshape(n_pos * _C2, _NCLS)
    wfc = jnp.pad(wfc, ((0, 0), (0, _NCLS_PAD - _NCLS))).astype(jnp.bfloat16)
    bfc = jnp.pad(params["fc_b"].reshape(1, _NCLS),
                  ((0, 0), (0, _NCLS_PAD - _NCLS))).astype(jnp.float32)

    def _full(a):
        nd = a.ndim
        return pl.BlockSpec(a.shape, lambda i, _n=nd: (0,) * _n)  # same block every step

    out = pl.pallas_call(
        _make_kernel(BT, geo),
        grid=(grid,),
        out_shape=jax.ShapeDtypeStruct((B_pad, 1, _NCLS_PAD), jnp.float32),
        in_specs=[
            pl.BlockSpec((BT, rows_in, _C_IN), lambda i: (i, 0, 0)),   # BT images / step
            _full(w1f), _full(b1), _full(w2f), _full(b2), _full(wfc), _full(bfc),
        ],
        out_specs=pl.BlockSpec((BT, 1, _NCLS_PAD), lambda i: (i, 0, 0)),
        compiler_params=pltpu.CompilerParams(
            dimension_semantics=("parallel",),    # megacore: batch tiles split across TCs
        ),
    )(x, w1f, b1, w2f, b2, wfc, bfc)
    return out.reshape(B_pad, _NCLS_PAD)[:B, :_NCLS]


# ---------------------------------------------------------------------------
# Parameters (deterministic, PyTorch-like uniform init) and a pure-JAX reference
# ---------------------------------------------------------------------------
def init_params(key, image_size):
    s = image_size
    for _ in range(2):
        s -= 2
        s = math.floor(s / 2)
    fc_in = _C2 * s * s

    def _uniform(k, shape, fan_in):
        bound = 1.0 / math.sqrt(fan_in)
        return jax.random.uniform(k, shape, jnp.float32, -bound, bound)

    ks = jax.random.split(key, 6)
    return {
        "w1": _uniform(ks[0], (_C1, _C_IN, _K, _K), _C_IN * _K * _K),
        "b1": _uniform(ks[1], (_C1,), _C_IN * _K * _K),
        "w2": _uniform(ks[2], (_C2, _C1, _K, _K), _C1 * _K * _K),
        "b2": _uniform(ks[3], (_C2,), _C1 * _K * _K),
        "fc_w": _uniform(ks[4], (_NCLS, fc_in), fc_in),
        "fc_b": _uniform(ks[5], (_NCLS,), fc_in),
    }


def _reference_forward(params, x_nchw):
    """Pure-JAX reference (same bf16 matmul operands / f32 accumulation as the kernel)."""
    x = jnp.transpose(x_nchw.astype(jnp.float32), (0, 2, 3, 1))

    def conv_relu(h, w, b):
        w = jnp.transpose(w, (2, 3, 1, 0)).astype(jnp.bfloat16)    # HWIO
        y = jax.lax.conv_general_dilated(
            h.astype(jnp.bfloat16), w, (1, 1), "VALID",
            dimension_numbers=("NHWC", "HWIO", "NHWC"),
            preferred_element_type=jnp.float32)
        return jnp.maximum(y + b, 0.0)

    def pool(y):
        b, h, w, c = y.shape
        ph, pw = h // 2, w // 2
        y = y[:, :2 * ph, :2 * pw, :].reshape(b, ph, 2, pw, 2, c)
        return y.max(axis=(2, 4))

    h = pool(conv_relu(x, params["w1"], params["b1"]))
    h = pool(conv_relu(h, params["w2"], params["b2"]))
    flat = jnp.transpose(h, (0, 3, 1, 2)).reshape(h.shape[0], -1)
    return (jnp.dot(flat.astype(jnp.bfloat16),
                    params["fc_w"].T.astype(jnp.bfloat16),
                    preferred_element_type=jnp.float32) + params["fc_b"])


if __name__ == "__main__":
    image_size = 16
    batch = 2
    key = jax.random.PRNGKey(0)
    k_x, k_p = jax.random.split(key)

    x = jax.random.normal(k_x, (batch, 3, image_size, image_size), jnp.float32)
    params = init_params(k_p, image_size)

    out = cnn_forward(params, x)
    jax.block_until_ready(out)
    assert out.shape == (batch, 3) and out.dtype == jnp.float32
    assert bool(jnp.all(jnp.isfinite(out)))

    ref = _reference_forward(params, x)
    assert bool(jnp.max(jnp.abs(out - ref)) < 5e-2)
    print("KERNEL_OK")
</pallas_src>

<mosaic_0001>
module attributes {stable_mosaic.version = 11 : i64} {
  func.func @kernel(%arg0: i32, %arg1: memref<1x256x3xbf16, #tpu.memory_space<vmem>>, %arg2: memref<27x16xbf16, #tpu.memory_space<vmem>>, %arg3: memref<1x16xf32, #tpu.memory_space<vmem>>, %arg4: memref<144x32xbf16, #tpu.memory_space<vmem>>, %arg5: memref<1x32xf32, #tpu.memory_space<vmem>>, %arg6: memref<128x128xbf16, #tpu.memory_space<vmem>>, %arg7: memref<1x128xf32, #tpu.memory_space<vmem>>, %arg8: memref<1x1x128xf32, #tpu.memory_space<vmem>>) attributes {dimension_semantics = [#tpu.dimension_semantics<parallel>], iteration_bounds = array<i64: 2>, scalar_prefetch = 0 : i64, scratch_operands = 0 : i64, tpu.core_type = #tpu.core_type<tc>, window_params = [{transform_indices = @transform_0, window_bounds = array<i64: 1, 256, 3>}, {pipeline_mode = #tpu.pipeline_mode<synchronous>, transform_indices = @transform_1, window_bounds = array<i64: 27, 16>}, {pipeline_mode = #tpu.pipeline_mode<synchronous>, transform_indices = @transform_2, window_bounds = array<i64: 1, 16>}, {pipeline_mode = #tpu.pipeline_mode<synchronous>, transform_indices = @transform_3, window_bounds = array<i64: 144, 32>}, {pipeline_mode = #tpu.pipeline_mode<synchronous>, transform_indices = @transform_4, window_bounds = array<i64: 1, 32>}, {pipeline_mode = #tpu.pipeline_mode<synchronous>, transform_indices = @transform_5, window_bounds = array<i64: 128, 128>}, {pipeline_mode = #tpu.pipeline_mode<synchronous>, transform_indices = @transform_6, window_bounds = array<i64: 1, 128>}, {transform_indices = @transform_7, window_bounds = array<i64: 1, 1, 128>}]} {
    %c0 = arith.constant 0 : index
    %c0_0 = arith.constant 0 : index
    %c0_1 = arith.constant 0 : index
    %0 = vector.load %arg1[%c0, %c0_0, %c0_1] : memref<1x256x3xbf16, #tpu.memory_space<vmem>>, vector<1x208x3xbf16>
    %c0_2 = arith.constant 0 : index
    %c1 = arith.constant 1 : index
    %c0_3 = arith.constant 0 : index
    %1 = vector.load %arg1[%c0_2, %c1, %c0_3] : memref<1x256x3xbf16, #tpu.memory_space<vmem>>, vector<1x208x3xbf16>
    %c0_4 = arith.constant 0 : index
    %c2 = arith.constant 2 : index
    %c0_5 = arith.constant 0 : index
    %2 = vector.load %arg1[%c0_4, %c2, %c0_5] : memref<1x256x3xbf16, #tpu.memory_space<vmem>>, vector<1x208x3xbf16>
    %c0_6 = arith.constant 0 : index
    %c16 = arith.constant 16 : index
    %c0_7 = arith.constant 0 : index
    %3 = vector.load %arg1[%c0_6, %c16, %c0_7] : memref<1x256x3xbf16, #tpu.memory_space<vmem>>, vector<1x208x3xbf16>
    %c0_8 = arith.constant 0 : index
    %c17 = arith.constant 17 : index
    %c0_9 = arith.constant 0 : index
    %4 = vector.load %arg1[%c0_8, %c17, %c0_9] : memref<1x256x3xbf16, #tpu.memory_space<vmem>>, vector<1x208x3xbf16>
    %c0_10 = arith.constant 0 : index
    %c18 = arith.constant 18 : index
    %c0_11 = arith.constant 0 : index
    %5 = vector.load %arg1[%c0_10, %c18, %c0_11] : memref<1x256x3xbf16, #tpu.memory_space<vmem>>, vector<1x208x3xbf16>
    %c0_12 = arith.constant 0 : index
    %c32 = arith.constant 32 : index
    %c0_13 = arith.constant 0 : index
    %6 = vector.load %arg1[%c0_12, %c32, %c0_13] : memref<1x256x3xbf16, #tpu.memory_space<vmem>>, vector<1x208x3xbf16>
    %c0_14 = arith.constant 0 : index
    %c33 = arith.constant 33 : index
    %c0_15 = arith.constant 0 : index
    %7 = vector.load %arg1[%c0_14, %c33, %c0_15] : memref<1x256x3xbf16, #tpu.memory_space<vmem>>, vector<1x208x3xbf16>
    %c0_16 = arith.constant 0 : index
    %c34 = arith.constant 34 : index
    %c0_17 = arith.constant 0 : index
    %8 = vector.load %arg1[%c0_16, %c34, %c0_17] : memref<1x256x3xbf16, #tpu.memory_space<vmem>>, vector<1x208x3xbf16>
    %9 = tpu.concatenate %0, %1, %2, %3, %4, %5, %6, %7, %8 in 2 : vector<1x208x3xbf16>, vector<1x208x3xbf16>, vector<1x208x3xbf16>, vector<1x208x3xbf16>, vector<1x208x3xbf16>, vector<1x208x3xbf16>, vector<1x208x3xbf16>, vector<1x208x3xbf16>, vector<1x208x3xbf16> -> vector<1x208x27xbf16>
    %10 = vector.shape_cast %9 : vector<1x208x27xbf16> to vector<208x27xbf16>
    %c0_18 = arith.constant 0 : index
    %c0_19 = arith.constant 0 : index
    %11 = vector.load %arg2[%c0_18, %c0_19] : memref<27x16xbf16, #tpu.memory_space<vmem>>, vector<27x16xbf16>
    %cst = arith.constant dense<0.000000e+00> : vector<208x16xf32>
    %12 = tpu.matmul %10, %11, %cst {dimension_numbers = #tpu.dot_dimension_numbers<[1], [0], [0], [1], [0, 0, 1, 1], [], []>} : vector<208x27xbf16>, vector<27x16xbf16>, vector<208x16xf32> -> vector<208x16xf32>
    %c0_20 = arith.constant 0 : index
    %c0_21 = arith.constant 0 : index
    %13 = vector.load %arg3[%c0_20, %c0_21] : memref<1x16xf32, #tpu.memory_space<vmem>>, vector<1x16xf32>
    %14 = vector.broadcast %13 : vector<1x16xf32> to vector<208x16xf32>
    %15 = arith.addf %12, %14 : vector<208x16xf32>
    %cst_22 = arith.constant 0.000000e+00 : f32
    %16 = vector.broadcast %cst_22 : f32 to vector<208x16xf32>
    %17 = arith.maximumf %15, %16 : vector<208x16xf32>
    %18 = vector.shape_cast %17 : vector<208x16xf32> to vector<1x208x16xf32>
    %19 = vector.extract_strided_slice %18 {offsets = [0, 0, 0], sizes = [1, 180, 16], strides = [1, 1, 1]} : vector<1x208x16xf32> to vector<1x180x16xf32>
    %20 = vector.extract_strided_slice %18 {offsets = [0, 1, 0], sizes = [1, 180, 16], strides = [1, 1, 1]} : vector<1x208x16xf32> to vector<1x180x16xf32>
    %21 = arith.maximumf %19, %20 : vector<1x180x16xf32>
    %22 = vector.extract_strided_slice %18 {offsets = [0, 16, 0], sizes = [1, 180, 16], strides = [1, 1, 1]} : vector<1x208x16xf32> to vector<1x180x16xf32>
    %23 = vector.extract_strided_slice %18 {offsets = [0, 17, 0], sizes = [1, 180, 16], strides = [1, 1, 1]} : vector<1x208x16xf32> to vector<1x180x16xf32>
    %24 = arith.maximumf %22, %23 : vector<1x180x16xf32>
    %25 = arith.maximumf %21, %24 : vector<1x180x16xf32>
    %26 = arith.truncf %25 : vector<1x180x16xf32> to vector<1x180x16xbf16>
    %27 = vector.extract_strided_slice %26 {offsets = [0, 0, 0], sizes = [1, 112, 16], strides = [1, 1, 1]} : vector<1x180x16xbf16> to vector<1x112x16xbf16>
    %28 = vector.extract_strided_slice %26 {offsets = [0, 2, 0], sizes = [1, 112, 16], strides = [1, 1, 1]} : vector<1x180x16xbf16> to vector<1x112x16xbf16>
    %29 = vector.extract_strided_slice %26 {offsets = [0, 4, 0], sizes = [1, 112, 16], strides = [1, 1, 1]} : vector<1x180x16xbf16> to vector<1x112x16xbf16>
    %30 = vector.extract_strided_slice %26 {offsets = [0, 32, 0], sizes = [1, 112, 16], strides = [1, 1, 1]} : vector<1x180x16xbf16> to vector<1x112x16xbf16>
    %31 = vector.extract_strided_slice %26 {offsets = [0, 34, 0], sizes = [1, 112, 16], strides = [1, 1, 1]} : vector<1x180x16xbf16> to vector<1x112x16xbf16>
    %32 = vector.extract_strided_slice %26 {offsets = [0, 36, 0], sizes = [1, 112, 16], strides = [1, 1, 1]} : vector<1x180x16xbf16> to vector<1x112x16xbf16>
    %33 = vector.extract_strided_slice %26 {offsets = [0, 64, 0], sizes = [1, 112, 16], strides = [1, 1, 1]} : vector<1x180x16xbf16> to vector<1x112x16xbf16>
    %34 = vector.extract_strided_slice %26 {offsets = [0, 66, 0], sizes = [1, 112, 16], strides = [1, 1, 1]} : vector<1x180x16xbf16> to vector<1x112x16xbf16>
    %35 = vector.extract_strided_slice %26 {offsets = [0, 68, 0], sizes = [1, 112, 16], strides = [1, 1, 1]} : vector<1x180x16xbf16> to vector<1x112x16xbf16>
    %36 = tpu.concatenate %27, %28, %29, %30, %31, %32, %33, %34, %35 in 2 : vector<1x112x16xbf16>, vector<1x112x16xbf16>, vector<1x112x16xbf16>, vector<1x112x16xbf16>, vector<1x112x16xbf16>, vector<1x112x16xbf16>, vector<1x112x16xbf16>, vector<1x112x16xbf16>, vector<1x112x16xbf16> -> vector<1x112x144xbf16>
    %37 = vector.shape_cast %36 : vector<1x112x144xbf16> to vector<112x144xbf16>
    %c0_23 = arith.constant 0 : index
    %c0_24 = arith.constant 0 : index
    %38 = vector.load %arg4[%c0_23, %c0_24] : memref<144x32xbf16, #tpu.memory_space<vmem>>, vector<144x32xbf16>
    %cst_25 = arith.constant dense<0.000000e+00> : vector<112x32xf32>
    %39 = tpu.matmul %37, %38, %cst_25 {dimension_numbers = #tpu.dot_dimension_numbers<[1], [0], [0], [1], [0, 0, 1, 1], [], []>} : vector<112x144xbf16>, vector<144x32xbf16>, vector<112x32xf32> -> vector<112x32xf32>
    %c0_26 = arith.constant 0 : index
    %c0_27 = arith.constant 0 : index
    %40 = vector.load %arg5[%c0_26, %c0_27] : memref<1x32xf32, #tpu.memory_space<vmem>>, vector<1x32xf32>
    %41 = vector.broadcast %40 : vector<1x32xf32> to vector<112x32xf32>
    %42 = arith.addf %39, %41 : vector<112x32xf32>
    %cst_28 = arith.constant 0.000000e+00 : f32
    %43 = vector.broadcast %cst_28 : f32 to vector<112x32xf32>
    %44 = arith.maximumf %42, %43 : vector<112x32xf32>
    %45 = vector.shape_cast %44 : vector<112x32xf32> to vector<1x112x32xf32>
    %46 = vector.extract_strided_slice %45 {offsets = [0, 0, 0], sizes = [1, 69, 32], strides = [1, 1, 1]} : vector<1x112x32xf32> to vector<1x69x32xf32>
    %47 = vector.extract_strided_slice %45 {offsets = [0, 2, 0], sizes = [1, 69, 32], strides = [1, 1, 1]} : vector<1x112x32xf32> to vector<1x69x32xf32>
    %48 = arith.maximumf %46, %47 : vector<1x69x32xf32>
    %49 = vector.extract_strided_slice %45 {offsets = [0, 32, 0], sizes = [1, 69, 32], strides = [1, 1, 1]} : vector<1x112x32xf32> to vector<1x69x32xf32>
    %50 = vector.extract_strided_slice %45 {offsets = [0, 34, 0], sizes = [1, 69, 32], strides = [1, 1, 1]} : vector<1x112x32xf32> to vector<1x69x32xf32>
    %51 = arith.maximumf %49, %50 : vector<1x69x32xf32>
    %52 = arith.maximumf %48, %51 : vector<1x69x32xf32>
    %53 = arith.truncf %52 : vector<1x69x32xf32> to vector<1x69x32xbf16>
    %54 = vector.extract_strided_slice %53 {offsets = [0, 0, 0], sizes = [1, 1, 32], strides = [1, 1, 1]} : vector<1x69x32xbf16> to vector<1x1x32xbf16>
    %55 = vector.shape_cast %54 : vector<1x1x32xbf16> to vector<1x32xbf16>
    %56 = vector.extract_strided_slice %53 {offsets = [0, 4, 0], sizes = [1, 1, 32], strides = [1, 1, 1]} : vector<1x69x32xbf16> to vector<1x1x32xbf16>
    %57 = vector.shape_cast %56 : vector<1x1x32xbf16> to vector<1x32xbf16>
    %58 = vector.extract_strided_slice %53 {offsets = [0, 64, 0], sizes = [1, 1, 32], strides = [1, 1, 1]} : vector<1x69x32xbf16> to vector<1x1x32xbf16>
    %59 = vector.shape_cast %58 : vector<1x1x32xbf16> to vector<1x32xbf16>
    %60 = vector.extract_strided_slice %53 {offsets = [0, 68, 0], sizes = [1, 1, 32], strides = [1, 1, 1]} : vector<1x69x32xbf16> to vector<1x1x32xbf16>
    %61 = vector.shape_cast %60 : vector<1x1x32xbf16> to vector<1x32xbf16>
    %62 = tpu.concatenate %55, %57, %59, %61 in 1 : vector<1x32xbf16>, vector<1x32xbf16>, vector<1x32xbf16>, vector<1x32xbf16> -> vector<1x128xbf16>
    %c0_29 = arith.constant 0 : index
    %c0_30 = arith.constant 0 : index
    %63 = vector.load %arg6[%c0_29, %c0_30] : memref<128x128xbf16, #tpu.memory_space<vmem>>, vector<128x128xbf16>
    %cst_31 = arith.constant dense<0.000000e+00> : vector<1x128xf32>
    %64 = tpu.matmul %62, %63, %cst_31 {dimension_numbers = #tpu.dot_dimension_numbers<[1], [0], [0], [1], [0, 0, 1, 1], [], []>} : vector<1x128xbf16>, vector<128x128xbf16>, vector<1x128xf32> -> vector<1x128xf32>
    %c0_32 = arith.constant 0 : index
    %c0_33 = arith.constant 0 : index
    %65 = vector.load %arg7[%c0_32, %c0_33] : memref<1x128xf32, #tpu.memory_space<vmem>>, vector<1x128xf32>
    %66 = arith.addf %64, %65 : vector<1x128xf32>
    %67 = vector.shape_cast %66 : vector<1x128xf32> to vector<1x1x128xf32>
    %c0_34 = arith.constant 0 : index
    %c0_35 = arith.constant 0 : index
    %c0_36 = arith.constant 0 : index
    %68 = vector.load %arg8[%c0_34, %c0_35, %c0_36] : memref<1x1x128xf32, #tpu.memory_space<vmem>>, vector<1x1x128xf32>
    tpu.vector_store %arg8[%c0_34, %c0_35, %c0_36], %67 {strides = array<i32>} : memref<1x1x128xf32, #tpu.memory_space<vmem>>, vector<1x1x128xf32>,
    return
  }
  func.func @transform_0(%arg0: i32) -> (i32, i32, i32) {
    %c0_i32 = arith.constant 0 : i32
    %c0_i32_0 = arith.constant 0 : i32
    %c0_i32_1 = arith.constant 0 : i32
    return %arg0, %c0_i32, %c0_i32_0 : i32, i32, i32
  }
  func.func @transform_1(%arg0: i32) -> (i32, i32) {
    %c0_i32 = arith.constant 0 : i32
    %c0_i32_0 = arith.constant 0 : i32
    %c0_i32_1 = arith.constant 0 : i32
    return %c0_i32, %c0_i32_0 : i32, i32
  }
  func.func @transform_2(%arg0: i32) -> (i32, i32) {
    %c0_i32 = arith.constant 0 : i32
    %c0_i32_0 = arith.constant 0 : i32
    %c0_i32_1 = arith.constant 0 : i32
    return %c0_i32, %c0_i32_0 : i32, i32
  }
  func.func @transform_3(%arg0: i32) -> (i32, i32) {
    %c0_i32 = arith.constant 0 : i32
    %c0_i32_0 = arith.constant 0 : i32
    %c0_i32_1 = arith.constant 0 : i32
    return %c0_i32, %c0_i32_0 : i32, i32
  }
  func.func @transform_4(%arg0: i32) -> (i32, i32) {
    %c0_i32 = arith.constant 0 : i32
    %c0_i32_0 = arith.constant 0 : i32
    %c0_i32_1 = arith.constant 0 : i32
    return %c0_i32, %c0_i32_0 : i32, i32
  }
  func.func @transform_5(%arg0: i32) -> (i32, i32) {
    %c0_i32 = arith.constant 0 : i32
    %c0_i32_0 = arith.constant 0 : i32
    %c0_i32_1 = arith.constant 0 : i32
    return %c0_i32, %c0_i32_0 : i32, i32
  }
  func.func @transform_6(%arg0: i32) -> (i32, i32) {
    %c0_i32 = arith.constant 0 : i32
    %c0_i32_0 = arith.constant 0 : i32
    %c0_i32_1 = arith.constant 0 : i32
    return %c0_i32, %c0_i32_0 : i32, i32
  }
  func.func @transform_7(%arg0: i32) -> (i32, i32, i32) {
    %c0_i32 = arith.constant 0 : i32
    %c0_i32_0 = arith.constant 0 : i32
    %c0_i32_1 = arith.constant 0 : i32
    return %arg0, %c0_i32, %c0_i32_0 : i32, i32, i32
  }
}

</mosaic_0001>

<llo_original>
// kernel: cnn_forward.1
$region0: #{cnn_forward.1}
  #allocation0 [shape = 'u32[]', space=smem, size = 0x4, offset = 0x4, fixed_abs, tag = 'smem constant byte address 0x4 - core index']
  #allocation1 [shape = 'u32[72,128]{1,0:T(1,128)}', space=vmem, size = 0x9000, scoped, tag = 'internal scratch']
  %s0 = inlined_call_operand.vmem [shape: bf16[2,256,3], index: 0, kind: input, shape index: {}]
  %s1 = inlined_call_operand.vmem [shape: bf16[27,16], index: 1, kind: input, shape index: {}]
  %s2 = inlined_call_operand.vmem [shape: f32[1,16], index: 2, kind: input, shape index: {}]
  %s3 = inlined_call_operand.vmem [shape: bf16[144,32], index: 3, kind: input, shape index: {}]
  %s4 = inlined_call_operand.vmem [shape: f32[1,32], index: 4, kind: input, shape index: {}]
  %s5 = inlined_call_operand.vmem [shape: bf16[128,128], index: 5, kind: input, shape index: {}]
  %s6 = inlined_call_operand.vmem [shape: f32[1,128], index: 6, kind: input, shape index: {}]
  %s7 = inlined_call_operand.hbm [shape: f32[2,1,128], index: 7, kind: output, shape index: {}]
  %s8 = sld [smem:[#allocation0]]
  $region61: #{cnn_forward.1} parent=0
    _
  %s10 = ssub.s32 1, %s8
  %s11 = scalar_select 0, %s10, %s8
  $region1: #{cnn_forward.1} parent=0
    #allocation2 [shape = 'u8[1024]{0}', space=vmem, size = 0x400, scoped, tag = 'output window, operand 0']
    #allocation3 [shape = 's32[2]{0}', space=sflag, size = 0x8, scoped, tag = 'scoped memory for cnn_forward.1']
    %12 = vsyncpa [#allocation3], 0
    %s13 = scalar_lea.sflag [#allocation3], 1
    %14 = vsyncpa %s13, 0
    loop: start=0, step=1, limit=4
    $region2: #{cnn_forward.1} parent=1 // loop_pre_header
      _
    $region3: #{cnn_forward.1} parent=1 // loop_header
      %s16 = sphi 0, %s20
      %p17 = scmp.ge.s32.totalorder %s16, 4
      %s26 = sphi 0, %s28
      %s29 = sphi 0, %s26
      %s30 = sphi 0, %s29
      %s46 = sphi 0, %s30
      %s50 = sphi 0, %s50
      %s52 = sphi 0, %s50
      %s53 = sphi 0, %s52
      %s67 = sphi 0, %s53
      %s71 = sphi 0, %s71
      %s73 = sphi 0, %s71
      %s74 = sphi 0, %s73
      %s88 = sphi 0, %s74
      %s92 = sphi 0, %s92
      %s94 = sphi 0, %s92
      %s95 = sphi 0, %s94
      %s109 = sphi 0, %s95
      %s113 = sphi 0, %s113
      %s115 = sphi 0, %s113
      %s116 = sphi 0, %s115
      %s130 = sphi 0, %s116
      %s134 = sphi 0, %s134
      %s136 = sphi 0, %s134
      %s137 = sphi 0, %s136
      %s151 = sphi 0, %s137
      %s155 = sphi 0, %s155
      %s157 = sphi 0, %s155
      %s158 = sphi 0, %s157
      %s172 = sphi 0, %s158
      %s178 = sphi 0, %s180
      %s181 = sphi 0, %s178
      %s182 = sphi 0, %s181
      %s198 = sphi 0, %s182
    $region4: #{cnn_forward.1} parent=1 // loop_header_branch
      %19 = sbr.rel (%p17) target = $region8
    $region5: #{cnn_forward.1} parent=1 // loop_body
      %s21 = ssub.s32 %s16, 1
      %s22 = ssub.s32 %s16, 2
      %s23 = sadd.s32 %s16, 1
      %s24 = ssub.s32 %s16, %s23
      %p25 = scmp.eq.s32.totalorder %s24, 0
      %s27 = sadd.s32 %s26, 1
      %s28 = scalar_select %p25, %s26, %s27
      %p31 = pneg %p25
      %p32 = scmp.eq.s32.totalorder %s16, 1
      %p33 = por %p31, %p32
      %p34 = scmp.ne.s32.totalorder %s26, %s29
      %p35 = scmp.eq.s32.totalorder %s16, 0
      %p36 = por %p34, %p35
      %p37 = scmp.ne.s32.totalorder %s26, %s29
      %p38 = scmp.eq.s32.totalorder %s21, 1
      %p39 = por %p37, %p38
      %p40 = scmp.ne.s32.totalorder %s29, %s30
      %p41 = scmp.eq.s32.totalorder %s21, 0
      %p42 = por %p40, %p41
      %p43 = scmp.ne.s32.totalorder %s29, %s30
      %p44 = scmp.eq.s32.totalorder %s22, 1
      %p45 = por %p43, %p44
      %p47 = scmp.ne.s32.totalorder %s30, %s46
      %p48 = scmp.eq.s32.totalorder %s22, 0
      %p49 = por %p47, %p48
      %s51 = sadd.s32 %s50, 1
      %p54 = scmp.eq.s32.totalorder %s16, 1
      %p55 = scmp.ne.s32.totalorder %s50, %s52
      %p56 = scmp.eq.s32.totalorder %s16, 0
      %p57 = por %p55, %p56
      %p58 = scmp.ne.s32.totalorder %s50, %s52
      %p59 = scmp.eq.s32.totalorder %s21, 1
      %p60 = por %p58, %p59
      %p61 = scmp.ne.s32.totalorder %s52, %s53
      %p62 = scmp.eq.s32.totalorder %s21, 0
      %p63 = por %p61, %p62
      %p64 = scmp.ne.s32.totalorder %s52, %s53
      %p65 = scmp.eq.s32.totalorder %s22, 1
      %p66 = por %p64, %p65
      %p68 = scmp.ne.s32.totalorder %s53, %s67
      %p69 = scmp.eq.s32.totalorder %s22, 0
      %p70 = por %p68, %p69
      %s72 = sadd.s32 %s71, 1
      %p75 = scmp.eq.s32.totalorder %s16, 1
      %p76 = scmp.ne.s32.totalorder %s71, %s73
      %p77 = scmp.eq.s32.totalorder %s16, 0
      %p78 = por %p76, %p77
      %p79 = scmp.ne.s32.totalorder %s71, %s73
      %p80 = scmp.eq.s32.totalorder %s21, 1
      %p81 = por %p79, %p80
      %p82 = scmp.ne.s32.totalorder %s73, %s74
      %p83 = scmp.eq.s32.totalorder %s21, 0
      %p84 = por %p82, %p83
      %p85 = scmp.ne.s32.totalorder %s73, %s74
      %p86 = scmp.eq.s32.totalorder %s22, 1
      %p87 = por %p85, %p86
      %p89 = scmp.ne.s32.totalorder %s74, %s88
      %p90 = scmp.eq.s32.totalorder %s22, 0
      %p91 = por %p89, %p90
      %s93 = sadd.s32 %s92, 1
      %p96 = scmp.eq.s32.totalorder %s16, 1
      %p97 = scmp.ne.s32.totalorder %s92, %s94
      %p98 = scmp.eq.s32.totalorder %s16, 0
      %p99 = por %p97, %p98
      %p100 = scmp.ne.s32.totalorder %s92, %s94
      %p101 = scmp.eq.s32.totalorder %s21, 1
      %p102 = por %p100, %p101
      %p103 = scmp.ne.s32.totalorder %s94, %s95
      %p104 = scmp.eq.s32.totalorder %s21, 0
      %p105 = por %p103, %p104
      %p106 = scmp.ne.s32.totalorder %s94, %s95
      %p107 = scmp.eq.s32.totalorder %s22, 1
      %p108 = por %p106, %p107
      %p110 = scmp.ne.s32.totalorder %s95, %s109
      %p111 = scmp.eq.s32.totalorder %s22, 0
      %p112 = por %p110, %p111
      %s114 = sadd.s32 %s113, 1
      %p117 = scmp.eq.s32.totalorder %s16, 1
      %p118 = scmp.ne.s32.totalorder %s113, %s115
      %p119 = scmp.eq.s32.totalorder %s16, 0
      %p120 = por %p118, %p119
      %p121 = scmp.ne.s32.totalorder %s113, %s115
      %p122 = scmp.eq.s32.totalorder %s21, 1
      %p123 = por %p121, %p122
      %p124 = scmp.ne.s32.totalorder %s115, %s116
      %p125 = scmp.eq.s32.totalorder %s21, 0
      %p126 = por %p124, %p125
      %p127 = scmp.ne.s32.totalorder %s115, %s116
      %p128 = scmp.eq.s32.totalorder %s22, 1
      %p129 = por %p127, %p128
      %p131 = scmp.ne.s32.totalorder %s116, %s130
      %p132 = scmp.eq.s32.totalorder %s22, 0
      %p133 = por %p131, %p132
      %s135 = sadd.s32 %s134, 1
      %p138 = scmp.eq.s32.totalorder %s16, 1
      %p139 = scmp.ne.s32.totalorder %s134, %s136
      %p140 = scmp.eq.s32.totalorder %s16, 0
      %p141 = por %p139, %p140
      %p142 = scmp.ne.s32.totalorder %s134, %s136
      %p143 = scmp.eq.s32.totalorder %s21, 1
      %p144 = por %p142, %p143
      %p145 = scmp.ne.s32.totalorder %s136, %s137
      %p146 = scmp.eq.s32.totalorder %s21, 0
      %p147 = por %p145, %p146
      %p148 = scmp.ne.s32.totalorder %s136, %s137
      %p149 = scmp.eq.s32.totalorder %s22, 1
      %p150 = por %p148, %p149
      %p152 = scmp.ne.s32.totalorder %s137, %s151
      %p153 = scmp.eq.s32.totalorder %s22, 0
      %p154 = por %p152, %p153
      %s156 = sadd.s32 %s155, 1
      %p159 = scmp.eq.s32.totalorder %s16, 1
      %p160 = scmp.ne.s32.totalorder %s155, %s157
      %p161 = scmp.eq.s32.totalorder %s16, 0
      %p162 = por %p160, %p161
      %p163 = scmp.ne.s32.totalorder %s155, %s157
      %p164 = scmp.eq.s32.totalorder %s21, 1
      %p165 = por %p163, %p164
      %p166 = scmp.ne.s32.totalorder %s157, %s158
      %p167 = scmp.eq.s32.totalorder %s21, 0
      %p168 = por %p166, %p167
      %p169 = scmp.ne.s32.totalorder %s157, %s158
      %p170 = scmp.eq.s32.totalorder %s22, 1
      %p171 = por %p169, %p170
      %p173 = scmp.ne.s32.totalorder %s158, %s172
      %p174 = scmp.eq.s32.totalorder %s22, 0
      %p175 = por %p173, %p174
      %s176 = ssub.s32 %s16, %s23
      %p177 = scmp.eq.s32.totalorder %s176, 0
      %s179 = sadd.s32 %s178, 1
      %s180 = scalar_select %p177, %s178, %s179
      %p183 = pneg %p177
      %p184 = scmp.eq.s32.totalorder %s16, 1
      %p185 = por %p183, %p184
      %p186 = scmp.ne.s32.totalorder %s178, %s181
      %p187 = scmp.eq.s32.totalorder %s16, 0
      %p188 = por %p186, %p187
      %p189 = scmp.ne.s32.totalorder %s178, %s181
      %p190 = scmp.eq.s32.totalorder %s21, 1
      %p191 = por %p189, %p190
      %p192 = scmp.ne.s32.totalorder %s181, %s182
      %p193 = scmp.eq.s32.totalorder %s21, 0
      %p194 = por %p192, %p193
      %p195 = scmp.ne.s32.totalorder %s181, %s182
      %p196 = scmp.eq.s32.totalorder %s22, 1
      %p197 = por %p195, %p196
      %p199 = scmp.ne.s32.totalorder %s182, %s198
      %p200 = scmp.eq.s32.totalorder %s22, 0
      %p201 = por %p199, %p200
      %p202 = scmp.le.s32.totalorder 1, %s16
      %p203 = scmp.lt.s32.totalorder %s16, 3
      %p204 = pnand %p202, %p203
      %p205 = pneg %p204
      // Predicated region
      $region9: #{cnn_forward.1} parent=5 // pred_check
        _
      $region10: #{cnn_forward.1} parent=5 // pred_check_branch
        %207 = sbr.rel (%p204) target = $region12
      $region11: #{cnn_forward.1} parent=5 // pred_region
        %s208 = ssub.s32 %s16, 1
        // Predicated region
        $region13: #{cnn_forward.1} parent=11 // pred_check
          %p209 = pneg %p63
        $region14: #{cnn_forward.1} parent=11 // pred_check_branch
          %211 = sbr.rel (%p209) target = $region16
        $region15: #{cnn_forward.1} parent=11 // pred_region
          _
        $region16: #{cnn_forward.1} parent=11 // pred_fallthru
          _
        // Predicated region
        $region17: #{cnn_forward.1} parent=11 // pred_check
          %p212 = pneg %p84
        $region18: #{cnn_forward.1} parent=11 // pred_check_branch
          %214 = sbr.rel (%p212) target = $region20
        $region19: #{cnn_forward.1} parent=11 // pred_region
          _
        $region20: #{cnn_forward.1} parent=11 // pred_fallthru
          _
        // Predicated region
        $region21: #{cnn_forward.1} parent=11 // pred_check
          %p215 = pneg %p105
        $region22: #{cnn_forward.1} parent=11 // pred_check_branch
          %217 = sbr.rel (%p215) target = $region24
        $region23: #{cnn_forward.1} parent=11 // pred_region
          _
        $region24: #{cnn_forward.1} parent=11 // pred_fallthru
          _
        // Predicated region
        $region25: #{cnn_forward.1} parent=11 // pred_check
          %p218 = pneg %p126
        $region26: #{cnn_forward.1} parent=11 // pred_check_branch
          %220 = sbr.rel (%p218) target = $region28
        $region27: #{cnn_forward.1} parent=11 // pred_region
          _
        $region28: #{cnn_forward.1} parent=11 // pred_fallthru
          _
        // Predicated region
        $region29: #{cnn_forward.1} parent=11 // pred_check
          %p221 = pneg %p147
        $region30: #{cnn_forward.1} parent=11 // pred_check_branch
          %223 = sbr.rel (%p221) target = $region32
        $region31: #{cnn_forward.1} parent=11 // pred_region
          _
        $region32: #{cnn_forward.1} parent=11 // pred_fallthru
          _
        // Predicated region
        $region33: #{cnn_forward.1} parent=11 // pred_check
          %p224 = pneg %p168
        $region34: #{cnn_forward.1} parent=11 // pred_check_branch
          %226 = sbr.rel (%p224) target = $region36
        $region35: #{cnn_forward.1} parent=11 // pred_region
          _
        $region36: #{cnn_forward.1} parent=11 // pred_fallthru
          _
      $region12: #{cnn_forward.1} parent=5 // pred_fallthru
        _
      %p227 = scmp.lt.s32.totalorder %s16, 2
      // Predicated region
      $region37: #{cnn_forward.1} parent=5 // pred_check
        %p228 = pneg %p227
      $region38: #{cnn_forward.1} parent=5 // pred_check_branch
        %230 = sbr.rel (%p228) target = $region40
      $region39: #{cnn_forward.1} parent=5 // pred_region
        // Predicated region
        $region41: #{cnn_forward.1} parent=39 // pred_check
          %p231 = pneg %p36
        $region42: #{cnn_forward.1} parent=39 // pred_check_branch
          %233 = sbr.rel (%p231) target = $region44
        $region43: #{cnn_forward.1} parent=39 // pred_region
          %p234 = scmp.lt.s32.totalorder %s16, 1
          %s235 = scalar_select %p234, %s16, 1
          %s236 = smul.addr %s235, 32
          %s237 = smul.addr %s236, 4
          %s238 = scalar_lea.vmem %s0, %s237
        $region44: #{cnn_forward.1} parent=39 // pred_fallthru
          _
      $region40: #{cnn_forward.1} parent=5 // pred_fallthru
        _
      %p239 = scmp.le.s32.totalorder 1, %s16
      %p240 = scmp.lt.s32.totalorder %s16, 3
      %p241 = pnand %p239, %p240
      %p242 = pneg %p241
      // Predicated region
      $region45: #{cnn_forward.1} parent=5 // pred_check
        _
      $region46: #{cnn_forward.1} parent=5 // pred_check_branch
        %244 = sbr.rel (%p241) target = $region48
      $region47: #{cnn_forward.1} parent=5 // pred_region
        %s245 = ssub.s32 %s16, 1
        %p246 = scmp.lt.s32.totalorder %s21, 1
        %s247 = scalar_select %p246, %s21, 1
        %s248 = smul.addr %s247, 32
        %s249 = smul.addr %s248, 4
        %s250 = scalar_lea.vmem %s0, %s249
        %p251 = pneg %p42
        %p252 = pneg %p39
        %p253 = pneg %p63
        %p254 = pneg %p60
        %p255 = pneg %p84
        %p256 = pneg %p81
        %p257 = pneg %p105
        %p258 = pneg %p102
        %p259 = pneg %p126
        %p260 = pneg %p123
        %p261 = pneg %p147
        %p262 = pneg %p144
        %p263 = pneg %p168
        %p264 = pneg %p165
        %p265 = pneg %p194
        %p266 = pneg %p191
        %s267 = sand.u32 %s181, 1
        %s268 = scalar_lea.sflag [#allocation3], %s267
        %s269 = sand.u32 %s181, 1
        %s270 = scalar_lea.vmem [#allocation2], %s269
        %p271 = scmp.lt.s32.totalorder %s21, 1
        %s272 = scalar_select %p271, %s21, 1
        %s273 = smul.addr %s272, 32
        %s274 = smul.addr %s273, 4
        %s275 = scalar_lea.vmem %s0, %s274
        %v277 = vld [vmem:[%s275] sm:$0xf]
        %v278 = vld [vmem:[%s275 + $0x4] sm:$0xf]
        %v279 = vld [vmem:[%s275 + $0x8] sm:$0xf]
        %v280 = vld [vmem:[%s275 + $0xc] sm:$0xf]
        %v281 = vld [vmem:[%s275 + $0x10] sm:$0xf]
        %v282 = vld [vmem:[%s275 + $0x14] sm:$0xf]
        %v283 = vld [vmem:[%s275 + $0x18] sm:$0xf]
        %v284 = vld [vmem:[%s275 + $0x1c] sm:$0xf]
        %v285 = vld [vmem:[%s275 + $0x20] sm:$0xf]
        %v286 = vld [vmem:[%s275 + $0x24] sm:$0xf]
        %v287 = vld [vmem:[%s275 + $0x28] sm:$0xf]
        %v288 = vld [vmem:[%s275 + $0x2c] sm:$0xf]
        %v289 = vld [vmem:[%s275 + $0x30] sm:$0xf]
        %v290 = vld [vmem:[%s275 + $0x34] sm:$0xf]
        %v291 = vld [vmem:[%s275 + $0x38] sm:$0xf]
        %v292 = vld [vmem:[%s275 + $0x3c] sm:$0xf]
        %v293 = vld [vmem:[%s275 + $0x40] sm:$0xf]
        %v294 = vld [vmem:[%s275 + $0x44] sm:$0xf]
        %v295 = vld [vmem:[%s275 + $0x48] sm:$0xf]
        %v296 = vld [vmem:[%s275 + $0x4c] sm:$0xf]
        %v297 = vld [vmem:[%s275 + $0x50] sm:$0xf]
        %v298 = vld [vmem:[%s275 + $0x54] sm:$0xf]
        %v299 = vld [vmem:[%s275 + $0x58] sm:$0xf]
        %v300 = vld [vmem:[%s275 + $0x5c] sm:$0xf]
        %v301 = vld [vmem:[%s275 + $0x60] sm:$0xf]
        %v302 = vld [vmem:[%s275 + $0x64] sm:$0xf]
        %v303 = vld [vmem:[%s275 + $0x68] sm:$0x1]
        %v304 = vld [vmem:[%s275] sm:$0xe]
        %v305 = vld [vmem:[%s275 + $0x68] sm:$0xf]
        %v306 = vld [vmem:[%s275 + $0x6c] sm:$0xf]
        %v307 = vld [vmem:[%s275 + $0x70] sm:$0x1]
        %v308 = vld [vmem:[%s275 + $0x8] sm:$0xe]
        %v309 = vld [vmem:[%s275 + $0x70] sm:$0xf]
        %v310 = vld [vmem:[%s275 + $0x74] sm:$0xf]
        %v311 = vld [vmem:[%s275 + $0x78] sm:$0x1]
        %v312 = vld [vmem:[%s275 + $0x10] sm:$0xe]
        %v339 = vunpack.c.l.b16 %v277
        %v340 = vunpack.c.l.b16 %v278
        %v341 = vunpack.c.l.b16 %v279
        %v342 = vunpack.c.l.b16 %v280
        %v343 = vunpack.c.l.b16 %v281
        %v344 = vunpack.c.l.b16 %v282
        %v345 = vunpack.c.l.b16 %v283
        %v346 = vunpack.c.l.b16 %v284
        %v347 = vunpack.c.l.b16 %v285
        %v348 = vunpack.c.l.b16 %v286
        %v349 = vunpack.c.l.b16 %v287
        %v350 = vunpack.c.l.b16 %v288
        %v351 = vunpack.c.l.b16 %v289
        %v352 = vunpack.c.l.b16 %v290
        %v353 = vunpack.c.l.b16 %v291
        %v354 = vunpack.c.l.b16 %v292
        %v355 = vunpack.c.l.b16 %v293
        %v356 = vunpack.c.l.b16 %v294
        %v357 = vunpack.c.l.b16 %v295
        %v358 = vunpack.c.l.b16 %v296
        %v359 = vunpack.c.l.b16 %v297
        %v360 = vunpack.c.l.b16 %v298
        %v361 = vunpack.c.l.b16 %v299
        %v362 = vunpack.c.l.b16 %v300
        %v363 = vunpack.c.l.b16 %v301
        %v364 = vunpack.c.l.b16 %v302
        %v365 = vpack.c.b16 %v340, %v339
        %v366 = vpack.c.b16 %v342, %v341
        %v367 = vpack.c.b16 %v344, %v343
        %v368 = vpack.c.b16 %v346, %v345
        %v369 = vpack.c.b16 %v348, %v347
        %v370 = vpack.c.b16 %v350, %v349
        %v371 = vpack.c.b16 %v352, %v351
        %v372 = vpack.c.b16 %v354, %v353
        %v373 = vpack.c.b16 %v356, %v355
        %v374 = vpack.c.b16 %v358, %v357
        %v375 = vpack.c.b16 %v360, %v359
        %v376 = vpack.c.b16 %v362, %v361
        %v377 = vpack.c.b16 %v364, %v363
        %v379 = vunpack.c.l.b16 %v303
        %v380 = vpack.c.b16 %v379, %v379
        %vm381 = vsmask.f32 7424
        %v383 = vshrl.u32 %v365, 16
        %v385 = vshll.u32 %v365, 16
        %v387 = vrot.slane %v385, 1
        %v388 = vor.u32 %v383, %v387
        %v390 = vshll.u32 %v366, 16
        %v392 = vrot.slane %v390, 1
        %v393 = vsel %vm381, %v388, %v392
        %v394 = vshrl.u32 %v366, 16
        %v396 = vor.u32 %v394, %v392
        %v398 = vshll.u32 %v367, 16
        %v400 = vrot.slane %v398, 1
        %v401 = vsel %vm381, %v396, %v400
        %v402 = vshrl.u32 %v367, 16
        %v404 = vor.u32 %v402, %v400
        %v406 = vshll.u32 %v368, 16
        %v408 = vrot.slane %v406, 1
        %v409 = vsel %vm381, %v404, %v408
        %v410 = vshrl.u32 %v368, 16
        %v412 = vor.u32 %v410, %v408
        %v414 = vshll.u32 %v369, 16
        %v416 = vrot.slane %v414, 1
        %v417 = vsel %vm381, %v412, %v416
        %v418 = vshrl.u32 %v369, 16
        %v420 = vor.u32 %v418, %v416
        %v422 = vshll.u32 %v370, 16
        %v424 = vrot.slane %v422, 1
        %v425 = vsel %vm381, %v420, %v424
        %v426 = vshrl.u32 %v370, 16
        %v428 = vor.u32 %v426, %v424
        %v430 = vshll.u32 %v371, 16
        %v432 = vrot.slane %v430, 1
        %v433 = vsel %vm381, %v428, %v432
        %v434 = vshrl.u32 %v371, 16
        %v436 = vor.u32 %v434, %v432
        %v438 = vshll.u32 %v372, 16
        %v440 = vrot.slane %v438, 1
        %v441 = vsel %vm381, %v436, %v440
        %v442 = vshrl.u32 %v372, 16
        %v444 = vor.u32 %v442, %v440
        %v446 = vshll.u32 %v373, 16
        %v448 = vrot.slane %v446, 1
        %v449 = vsel %vm381, %v444, %v448
        %v450 = vshrl.u32 %v373, 16
        %v452 = vor.u32 %v450, %v448
        %v454 = vshll.u32 %v374, 16
        %v456 = vrot.slane %v454, 1
        %v457 = vsel %vm381, %v452, %v456
        %v458 = vshrl.u32 %v374, 16
        %v460 = vor.u32 %v458, %v456
        %v462 = vshll.u32 %v375, 16
        %v464 = vrot.slane %v462, 1
        %v465 = vsel %vm381, %v460, %v464
        %v466 = vshrl.u32 %v375, 16
        %v468 = vor.u32 %v466, %v464
        %v470 = vshll.u32 %v376, 16
        %v472 = vrot.slane %v470, 1
        %v473 = vsel %vm381, %v468, %v472
        %v474 = vshrl.u32 %v376, 16
        %v476 = vor.u32 %v474, %v472
        %v478 = vshll.u32 %v377, 16
        %v480 = vrot.slane %v478, 1
        %v481 = vsel %vm381, %v476, %v480
        %v482 = vshrl.u32 %v377, 16
        %v484 = vor.u32 %v482, %v480
        %v486 = vshll.u32 %v380, 16
        %v488 = vrot.slane %v486, 1
        %v489 = vsel %vm381, %v484, %v488
        %490 = vrot.lane.b32.xlu0 %v393, 3
        %v491 = vpop.permute.xlu0 %490
        %492 = vrot.lane.b32.xlu0 %v401, 3
        %v493 = vpop.permute.xlu0 %492
        %494 = vrot.lane.b32.xlu0 %v409, 3
        %v495 = vpop.permute.xlu0 %494
        %496 = vrot.lane.b32.xlu0 %v417, 3
        %v497 = vpop.permute.xlu0 %496
        %498 = vrot.lane.b32.xlu0 %v425, 3
        %v499 = vpop.permute.xlu0 %498
        %500 = vrot.lane.b32.xlu0 %v433, 3
        %v501 = vpop.permute.xlu0 %500
        %502 = vrot.lane.b32.xlu0 %v441, 3
        %v503 = vpop.permute.xlu0 %502
        %504 = vrot.lane.b32.xlu0 %v449, 3
        %v505 = vpop.permute.xlu0 %504
        %506 = vrot.lane.b32.xlu0 %v457, 3
        %v507 = vpop.permute.xlu0 %506
        %508 = vrot.lane.b32.xlu0 %v465, 3
        %v509 = vpop.permute.xlu0 %508
        %510 = vrot.lane.b32.xlu0 %v473, 3
        %v511 = vpop.permute.xlu0 %510
        %512 = vrot.lane.b32.xlu0 %v481, 3
        %v513 = vpop.permute.xlu0 %512
        %514 = vrot.lane.b32.xlu0 %v489, 3
        %v515 = vpop.permute.xlu0 %514
        %v517 = vunpack.c.l.b16 %v304
        %v518 = vpack.c.b16 %v340, %v517
        %vm519 = vcmask 1046528
        %v520 = vrot.slane %v518, 1
        %v521 = vrot.slane %v366, 1
        %v522 = vsel %vm519, %v520, %v521
        %v523 = vrot.slane %v367, 1
        %v524 = vsel %vm519, %v521, %v523
        %v525 = vrot.slane %v368, 1
        %v526 = vsel %vm519, %v523, %v525
        %v527 = vrot.slane %v369, 1
        %v528 = vsel %vm519, %v525, %v527
        %v529 = vrot.slane %v370, 1
        %v530 = vsel %vm519, %v527, %v529
        %v531 = vrot.slane %v371, 1
        %v532 = vsel %vm519, %v529, %v531
        %v533 = vrot.slane %v372, 1
        %v534 = vsel %vm519, %v531, %v533
        %v535 = vrot.slane %v373, 1
        %v536 = vsel %vm519, %v533, %v535
        %v537 = vrot.slane %v374, 1
        %v538 = vsel %vm519, %v535, %v537
        %v539 = vrot.slane %v375, 1
        %v540 = vsel %vm519, %v537, %v539
        %v541 = vrot.slane %v376, 1
        %v542 = vsel %vm519, %v539, %v541
        %v543 = vrot.slane %v377, 1
        %v544 = vsel %vm519, %v541, %v543
        %v545 = vrot.slane %v380, 1
        %v546 = vsel %vm519, %v543, %v545
        %547 = vrot.lane.b32.xlu0 %v522, 6
        %v548 = vpop.permute.xlu0 %547
        %549 = vrot.lane.b32.xlu0 %v524, 6
        %v550 = vpop.permute.xlu0 %549
        %551 = vrot.lane.b32.xlu0 %v526, 6
        %v552 = vpop.permute.xlu0 %551
        %553 = vrot.lane.b32.xlu0 %v528, 6
        %v554 = vpop.permute.xlu0 %553
        %555 = vrot.lane.b32.xlu0 %v530, 6
        %v556 = vpop.permute.xlu0 %555
        %557 = vrot.lane.b32.xlu0 %v532, 6
        %v558 = vpop.permute.xlu0 %557
        %559 = vrot.lane.b32.xlu0 %v534, 6
        %v560 = vpop.permute.xlu0 %559
        %561 = vrot.lane.b32.xlu0 %v536, 6
        %v562 = vpop.permute.xlu0 %561
        %563 = vrot.lane.b32.xlu0 %v538, 6
        %v564 = vpop.permute.xlu0 %563
        %565 = vrot.lane.b32.xlu0 %v540, 6
        %v566 = vpop.permute.xlu0 %565
        %567 = vrot.lane.b32.xlu0 %v542, 6
        %v568 = vpop.permute.xlu0 %567
        %569 = vrot.lane.b32.xlu0 %v544, 6
        %v570 = vpop.permute.xlu0 %569
        %571 = vrot.lane.b32.xlu0 %v546, 6
        %v572 = vpop.permute.xlu0 %571
        %v575 = vunpack.c.l.b16 %v305
        %v576 = vunpack.c.l.b16 %v306
        %v577 = vpack.c.b16 %v576, %v575
        %578 = vrot.lane.b32.xlu0 %v366, 9
        %v579 = vpop.permute.xlu0 %578
        %580 = vrot.lane.b32.xlu0 %v367, 9
        %v581 = vpop.permute.xlu0 %580
        %582 = vrot.lane.b32.xlu0 %v368, 9
        %v583 = vpop.permute.xlu0 %582
        %584 = vrot.lane.b32.xlu0 %v369, 9
        %v585 = vpop.permute.xlu0 %584
        %586 = vrot.lane.b32.xlu0 %v370, 9
        %v587 = vpop.permute.xlu0 %586
        %588 = vrot.lane.b32.xlu0 %v371, 9
        %v589 = vpop.permute.xlu0 %588
        %590 = vrot.lane.b32.xlu0 %v372, 9
        %v591 = vpop.permute.xlu0 %590
        %592 = vrot.lane.b32.xlu0 %v373, 9
        %v593 = vpop.permute.xlu0 %592
        %594 = vrot.lane.b32.xlu0 %v374, 9
        %v595 = vpop.permute.xlu0 %594
        %596 = vrot.lane.b32.xlu0 %v375, 9
        %v597 = vpop.permute.xlu0 %596
        %598 = vrot.lane.b32.xlu0 %v376, 9
        %v599 = vpop.permute.xlu0 %598
        %600 = vrot.lane.b32.xlu0 %v377, 9
        %v601 = vpop.permute.xlu0 %600
        %602 = vrot.lane.b32.xlu0 %v577, 9
        %v603 = vpop.permute.xlu0 %602
        %v605 = vunpack.c.l.b16 %v307
        %v606 = vpack.c.b16 %v605, %v605
        %v608 = vshll.u32 %v577, 16
        %v610 = vrot.slane %v608, 1
        %v611 = vsel %vm381, %v484, %v610
        %v612 = vshrl.u32 %v577, 16
        %v614 = vor.u32 %v612, %v610
        %v616 = vshll.u32 %v606, 16
        %v618 = vrot.slane %v616, 1
        %v619 = vsel %vm381, %v614, %v618
        %620 = vrot.lane.b32.xlu0 %v401, 12
        %v621 = vpop.permute.xlu0 %620
        %622 = vrot.lane.b32.xlu0 %v409, 12
        %v623 = vpop.permute.xlu0 %622
        %624 = vrot.lane.b32.xlu0 %v417, 12
        %v625 = vpop.permute.xlu0 %624
        %626 = vrot.lane.b32.xlu0 %v425, 12
        %v627 = vpop.permute.xlu0 %626
        %628 = vrot.lane.b32.xlu0 %v433, 12
        %v629 = vpop.permute.xlu0 %628
        %630 = vrot.lane.b32.xlu0 %v441, 12
        %v631 = vpop.permute.xlu0 %630
        %632 = vrot.lane.b32.xlu0 %v449, 12
        %v633 = vpop.permute.xlu0 %632
        %634 = vrot.lane.b32.xlu0 %v457, 12
        %v635 = vpop.permute.xlu0 %634
        %636 = vrot.lane.b32.xlu0 %v465, 12
        %v637 = vpop.permute.xlu0 %636
        %638 = vrot.lane.b32.xlu0 %v473, 12
        %v639 = vpop.permute.xlu0 %638
        %640 = vrot.lane.b32.xlu0 %v481, 12
        %v641 = vpop.permute.xlu0 %640
        %642 = vrot.lane.b32.xlu0 %v611, 12
        %v643 = vpop.permute.xlu0 %642
        %644 = vrot.lane.b32.xlu0 %v619, 12
        %v645 = vpop.permute.xlu0 %644
        %v647 = vunpack.c.l.b16 %v308
        %v648 = vpack.c.b16 %v342, %v647
        %v649 = vrot.slane %v648, 1
        %v650 = vsel %vm519, %v649, %v523
        %v651 = vrot.slane %v577, 1
        %v652 = vsel %vm519, %v543, %v651
        %v653 = vrot.slane %v606, 1
        %v654 = vsel %vm519, %v651, %v653
        %655 = vrot.lane.b32.xlu0 %v650, 15
        %v656 = vpop.permute.xlu0 %655
        %657 = vrot.lane.b32.xlu0 %v526, 15
        %v658 = vpop.permute.xlu0 %657
        %659 = vrot.lane.b32.xlu0 %v528, 15
        %v660 = vpop.permute.xlu0 %659
        %661 = vrot.lane.b32.xlu0 %v530, 15
        %v662 = vpop.permute.xlu0 %661
        %663 = vrot.lane.b32.xlu0 %v532, 15
        %v664 = vpop.permute.xlu0 %663
        %665 = vrot.lane.b32.xlu0 %v534, 15
        %v666 = vpop.permute.xlu0 %665
        %667 = vrot.lane.b32.xlu0 %v536, 15
        %v668 = vpop.permute.xlu0 %667
        %669 = vrot.lane.b32.xlu0 %v538, 15
        %v670 = vpop.permute.xlu0 %669
        %671 = vrot.lane.b32.xlu0 %v540, 15
        %v672 = vpop.permute.xlu0 %671
        %673 = vrot.lane.b32.xlu0 %v542, 15
        %v674 = vpop.permute.xlu0 %673
        %675 = vrot.lane.b32.xlu0 %v544, 15
        %v676 = vpop.permute.xlu0 %675
        %677 = vrot.lane.b32.xlu0 %v652, 15
        %v678 = vpop.permute.xlu0 %677
        %679 = vrot.lane.b32.xlu0 %v654, 15
        %v680 = vpop.permute.xlu0 %679
        %v683 = vunpack.c.l.b16 %v309
        %v684 = vunpack.c.l.b16 %v310
        %v685 = vpack.c.b16 %v684, %v683
        %686 = vrot.lane.b32.xlu0 %v367, 18
        %v687 = vpop.permute.xlu0 %686
        %688 = vrot.lane.b32.xlu0 %v368, 18
        %v689 = vpop.permute.xlu0 %688
        %690 = vrot.lane.b32.xlu0 %v369, 18
        %v691 = vpop.permute.xlu0 %690
        %692 = vrot.lane.b32.xlu0 %v370, 18
        %v693 = vpop.permute.xlu0 %692
        %694 = vrot.lane.b32.xlu0 %v371, 18
        %v695 = vpop.permute.xlu0 %694
        %696 = vrot.lane.b32.xlu0 %v372, 18
        %v697 = vpop.permute.xlu0 %696
        %698 = vrot.lane.b32.xlu0 %v373, 18
        %v699 = vpop.permute.xlu0 %698
        %700 = vrot.lane.b32.xlu0 %v374, 18
        %v701 = vpop.permute.xlu0 %700
        %702 = vrot.lane.b32.xlu0 %v375, 18
        %v703 = vpop.permute.xlu0 %702
        %704 = vrot.lane.b32.xlu0 %v376, 18
        %v705 = vpop.permute.xlu0 %704
        %706 = vrot.lane.b32.xlu0 %v377, 18
        %v707 = vpop.permute.xlu0 %706
        %708 = vrot.lane.b32.xlu0 %v577, 18
        %v709 = vpop.permute.xlu0 %708
        %710 = vrot.lane.b32.xlu0 %v685, 18
        %v711 = vpop.permute.xlu0 %710
        %v713 = vunpack.c.l.b16 %v311
        %v714 = vpack.c.b16 %v713, %v713
        %v716 = vshll.u32 %v685, 16
        %v718 = vrot.slane %v716, 1
        %v719 = vsel %vm381, %v614, %v718
        %v720 = vshrl.u32 %v685, 16
        %v722 = vor.u32 %v720, %v718
        %v724 = vshll.u32 %v714, 16
        %v726 = vrot.slane %v724, 1
        %v727 = vsel %vm381, %v722, %v726
        %728 = vrot.lane.b32.xlu0 %v409, 21
        %v729 = vpop.permute.xlu0 %728
        %730 = vrot.lane.b32.xlu0 %v417, 21
        %v731 = vpop.permute.xlu0 %730
        %732 = vrot.lane.b32.xlu0 %v425, 21
        %v733 = vpop.permute.xlu0 %732
        %734 = vrot.lane.b32.xlu0 %v433, 21
        %v735 = vpop.permute.xlu0 %734
        %736 = vrot.lane.b32.xlu0 %v441, 21
        %v737 = vpop.permute.xlu0 %736
        %738 = vrot.lane.b32.xlu0 %v449, 21
        %v739 = vpop.permute.xlu0 %738
        %740 = vrot.lane.b32.xlu0 %v457, 21
        %v741 = vpop.permute.xlu0 %740
        %742 = vrot.lane.b32.xlu0 %v465, 21
        %v743 = vpop.permute.xlu0 %742
        %744 = vrot.lane.b32.xlu0 %v473, 21
        %v745 = vpop.permute.xlu0 %744
        %746 = vrot.lane.b32.xlu0 %v481, 21
        %v747 = vpop.permute.xlu0 %746
        %748 = vrot.lane.b32.xlu0 %v611, 21
        %v749 = vpop.permute.xlu0 %748
        %750 = vrot.lane.b32.xlu0 %v719, 21
        %v751 = vpop.permute.xlu0 %750
        %752 = vrot.lane.b32.xlu0 %v727, 21
        %v753 = vpop.permute.xlu0 %752
        %v755 = vunpack.c.l.b16 %v312
        %v756 = vpack.c.b16 %v344, %v755
        %v757 = vrot.slane %v756, 1
        %v758 = vsel %vm519, %v757, %v525
        %v759 = vrot.slane %v685, 1
        %v760 = vsel %vm519, %v651, %v759
        %v761 = vrot.slane %v714, 1
        %v762 = vsel %vm519, %v759, %v761
        %763 = vrot.lane.b32.xlu0 %v758, 24
        %v764 = vpop.permute.xlu0 %763
        %765 = vrot.lane.b32.xlu0 %v528, 24
        %v766 = vpop.permute.xlu0 %765
        %767 = vrot.lane.b32.xlu0 %v530, 24
        %v768 = vpop.permute.xlu0 %767
        %769 = vrot.lane.b32.xlu0 %v532, 24
        %v770 = vpop.permute.xlu0 %769
        %771 = vrot.lane.b32.xlu0 %v534, 24
        %v772 = vpop.permute.xlu0 %771
        %773 = vrot.lane.b32.xlu0 %v536, 24
        %v774 = vpop.permute.xlu0 %773
        %775 = vrot.lane.b32.xlu0 %v538, 24
        %v776 = vpop.permute.xlu0 %775
        %777 = vrot.lane.b32.xlu0 %v540, 24
        %v778 = vpop.permute.xlu0 %777
        %779 = vrot.lane.b32.xlu0 %v542, 24
        %v780 = vpop.permute.xlu0 %779
        %781 = vrot.lane.b32.xlu0 %v544, 24
        %v782 = vpop.permute.xlu0 %781
        %783 = vrot.lane.b32.xlu0 %v652, 24
        %v784 = vpop.permute.xlu0 %783
        %785 = vrot.lane.b32.xlu0 %v760, 24
        %v786 = vpop.permute.xlu0 %785
        %787 = vrot.lane.b32.xlu0 %v762, 24
        %v788 = vpop.permute.xlu0 %787
        %vm789 = vcmask 23552
        %v791 = vsel %vm789, %v365, %v491
        %v793 = vsel %vm789, %v366, %v493
        %v795 = vsel %vm789, %v367, %v495
        %v797 = vsel %vm789, %v368, %v497
        %v799 = vsel %vm789, %v369, %v499
        %v801 = vsel %vm789, %v370, %v501
        %v803 = vsel %vm789, %v371, %v503
        %v805 = vsel %vm789, %v372, %v505
        %v807 = vsel %vm789, %v373, %v507
        %v809 = vsel %vm789, %v374, %v509
        %v811 = vsel %vm789, %v375, %v511
        %v813 = vsel %vm789, %v376, %v513
        %v815 = vsel %vm789, %v377, %v515
        %vm816 = vcmask 48128
        %v818 = vsel %vm816, %v791, %v548
        %v820 = vsel %vm816, %v793, %v550
        %v822 = vsel %vm816, %v795, %v552
        %v824 = vsel %vm816, %v797, %v554
        %v826 = vsel %vm816, %v799, %v556
        %v828 = vsel %vm816, %v801, %v558
        %v830 = vsel %vm816, %v803, %v560
        %v832 = vsel %vm816, %v805, %v562
        %v834 = vsel %vm816, %v807, %v564
        %v836 = vsel %vm816, %v809, %v566
        %v838 = vsel %vm816, %v811, %v568
        %v840 = vsel %vm816, %v813, %v570
        %v842 = vsel %vm816, %v815, %v572
        %vm843 = vcmask 72704
        %v845 = vsel %vm843, %v818, %v579
        %v847 = vsel %vm843, %v820, %v581
        %v849 = vsel %vm843, %v822, %v583
        %v851 = vsel %vm843, %v824, %v585
        %v853 = vsel %vm843, %v826, %v587
        %v855 = vsel %vm843, %v828, %v589
        %v857 = vsel %vm843, %v830, %v591
        %v859 = vsel %vm843, %v832, %v593
        %v861 = vsel %vm843, %v834, %v595
        %v863 = vsel %vm843, %v836, %v597
        %v865 = vsel %vm843, %v838, %v599
        %v867 = vsel %vm843, %v840, %v601
        %v869 = vsel %vm843, %v842, %v603
        %vm870 = vcmask 97280
        %v872 = vsel %vm870, %v845, %v621
        %v874 = vsel %vm870, %v847, %v623
        %v876 = vsel %vm870, %v849, %v625
        %v878 = vsel %vm870, %v851, %v627
        %v880 = vsel %vm870, %v853, %v629
        %v882 = vsel %vm870, %v855, %v631
        %v884 = vsel %vm870, %v857, %v633
        %v886 = vsel %vm870, %v859, %v635
        %v888 = vsel %vm870, %v861, %v637
        %v890 = vsel %vm870, %v863, %v639
        %v892 = vsel %vm870, %v865, %v641
        %v894 = vsel %vm870, %v867, %v643
        %v896 = vsel %vm870, %v869, %v645
        %vm897 = vcmask 121856
        %v899 = vsel %vm897, %v872, %v656
        %v901 = vsel %vm897, %v874, %v658
        %v903 = vsel %vm897, %v876, %v660
        %v905 = vsel %vm897, %v878, %v662
        %v907 = vsel %vm897, %v880, %v664
        %v909 = vsel %vm897, %v882, %v666
        %v911 = vsel %vm897, %v884, %v668
        %v913 = vsel %vm897, %v886, %v670
        %v915 = vsel %vm897, %v888, %v672
        %v917 = vsel %vm897, %v890, %v674
        %v919 = vsel %vm897, %v892, %v676
        %v921 = vsel %vm897, %v894, %v678
        %v923 = vsel %vm897, %v896, %v680
        %vm924 = vcmask 146432
        %v926 = vsel %vm924, %v899, %v687
        %v928 = vsel %vm924, %v901, %v689
        %v930 = vsel %vm924, %v903, %v691
        %v932 = vsel %vm924, %v905, %v693
        %v934 = vsel %vm924, %v907, %v695
        %v936 = vsel %vm924, %v909, %v697
        %v938 = vsel %vm924, %v911, %v699
        %v940 = vsel %vm924, %v913, %v701
        %v942 = vsel %vm924, %v915, %v703
        %v944 = vsel %vm924, %v917, %v705
        %v946 = vsel %vm924, %v919, %v707
        %v948 = vsel %vm924, %v921, %v709
        %v950 = vsel %vm924, %v923, %v711
        %vm951 = vcmask 171008
        %v953 = vsel %vm951, %v926, %v729
        %v955 = vsel %vm951, %v928, %v731
        %v957 = vsel %vm951, %v930, %v733
        %v959 = vsel %vm951, %v932, %v735
        %v961 = vsel %vm951, %v934, %v737
        %v963 = vsel %vm951, %v936, %v739
        %v965 = vsel %vm951, %v938, %v741
        %v967 = vsel %vm951, %v940, %v743
        %v969 = vsel %vm951, %v942, %v745
        %v971 = vsel %vm951, %v944, %v747
        %v973 = vsel %vm951, %v946, %v749
        %v975 = vsel %vm951, %v948, %v751
        %v977 = vsel %vm951, %v950, %v753
        %vm978 = vcmask 195584
        %v980 = vsel %vm978, %v953, %v764
        %v982 = vsel %vm978, %v955, %v766
        %v984 = vsel %vm978, %v957, %v768
        %v986 = vsel %vm978, %v959, %v770
        %v988 = vsel %vm978, %v961, %v772
        %v990 = vsel %vm978, %v963, %v774
        %v992 = vsel %vm978, %v965, %v776
        %v994 = vsel %vm978, %v967, %v778
        %v996 = vsel %vm978, %v969, %v780
        %v998 = vsel %vm978, %v971, %v782
        %v1000 = vsel %vm978, %v973, %v784
        %v1002 = vsel %vm978, %v975, %v786
        %v1004 = vsel %vm978, %v977, %v788
        %v1005 = vld [vmem:[%s1] sm:$0xf]
        %v1006 = vld [vmem:[%s1 + $0x4] sm:$0xf]
        %v1007 = vld [vmem:[%s1 + $0x8] sm:$0xf]
        %v1008 = vld [vmem:[%s1 + $0xc] sm:$0x3]
        %v1009 = vld [vmem:[%s2] sm:$0x1]
        %v1011 = vperm.slane %v1009, 0
        %v1017 = vunpack.c.l.b16 %v1005
        %v1018 = vunpack.c.l.b16 %v1006
        %v1019 = vunpack.c.l.b16 %v1007
        %v1020 = vunpack.c.l.b16 %v1008
        %v1021 = vpack.c.b16 %v1018, %v1017
        %v1022 = vpack.c.b16 %v1020, %v1019
        %vm1024 = vcmask 220160
        %v1025 = vsel %vm1024, %v980, 0
        %v1027 = vsel %vm1024, %v982, 0
        %v1029 = vsel %vm1024, %v984, 0
        %v1031 = vsel %vm1024, %v986, 0
        %v1033 = vsel %vm1024, %v988, 0
        %v1035 = vsel %vm1024, %v990, 0
        %v1037 = vsel %vm1024, %v992, 0
        %v1039 = vsel %vm1024, %v994, 0
        %v1041 = vsel %vm1024, %v996, 0
        %v1043 = vsel %vm1024, %v998, 0
        %v1045 = vsel %vm1024, %v1000, 0
        %v1047 = vsel %vm1024, %v1002, 0
        %v1049 = vsel %vm1024, %v1004, 0
        %vm1051 = vcmask 1044480
        %vm1052 = vcmask 1045504
        %v1053 = vsel %vm1051, 4294967295, 65535
        %v1054 = vsel %vm1052, %v1053, 0
        %v1056 = vand.u32 %v1022, %v1054
        %1058 = vmatpush.bf16.msra.mxu0 0
        %1059 = vmatpush.bf16.msra.mxu0 0
        %1060 = vmatpush.bf16.msra.mxu0 0
        %1061 = vmatpush.bf16.msra.mxu0 0
        %1062 = vmatpush.bf16.msra.mxu0 0
        %1063 = vmatpush.bf16.msra.mxu0 0
        %1064 = vmatpush.bf16.msra.mxu0 %v1056
        %1065 = vmatpush.bf16.msra.mxu0 %v1021
        %1066 = vmatmul.bf16.gmra.mxu0 %v1025
        %v1067 = vpop.f32.mrf.mxu0
        %v1068 = vadd.f32 %v1011, %v1067
        %v1069 = vpop.f32.mrf.mxu0
        %v1070 = vadd.f32 %v1011, %v1069
        %1071 = vmatmul.bf16.gmra.mxu0 %v1027
        %v1072 = vpop.f32.mrf.mxu0
        %v1073 = vadd.f32 %v1011, %v1072
        %v1074 = vpop.f32.mrf.mxu0
        %v1075 = vadd.f32 %v1011, %v1074
        %1076 = vmatmul.bf16.gmra.mxu0 %v1029
        %v1077 = vpop.f32.mrf.mxu0
        %v1078 = vadd.f32 %v1011, %v1077
        %v1079 = vpop.f32.mrf.mxu0
        %v1080 = vadd.f32 %v1011, %v1079
        %1081 = vmatmul.bf16.gmra.mxu0 %v1031
        %v1082 = vpop.f32.mrf.mxu0
        %v1083 = vadd.f32 %v1011, %v1082
        %v1084 = vpop.f32.mrf.mxu0
        %v1085 = vadd.f32 %v1011, %v1084
        %1086 = vmatmul.bf16.gmra.mxu0 %v1033
        %v1087 = vpop.f32.mrf.mxu0
        %v1088 = vadd.f32 %v1011, %v1087
        %v1089 = vpop.f32.mrf.mxu0
        %v1090 = vadd.f32 %v1011, %v1089
        %1091 = vmatmul.bf16.gmra.mxu0 %v1035
        %v1092 = vpop.f32.mrf.mxu0
        %v1093 = vadd.f32 %v1011, %v1092
        %v1094 = vpop.f32.mrf.mxu0
        %v1095 = vadd.f32 %v1011, %v1094
        %1096 = vmatmul.bf16.gmra.mxu0 %v1037
        %v1097 = vpop.f32.mrf.mxu0
        %v1098 = vadd.f32 %v1011, %v1097
        %v1099 = vpop.f32.mrf.mxu0
        %v1100 = vadd.f32 %v1011, %v1099
        %1101 = vmatmul.bf16.gmra.mxu0 %v1039
        %v1102 = vpop.f32.mrf.mxu0
        %v1103 = vadd.f32 %v1011, %v1102
        %v1104 = vpop.f32.mrf.mxu0
        %v1105 = vadd.f32 %v1011, %v1104
        %1106 = vmatmul.bf16.gmra.mxu0 %v1041
        %v1107 = vpop.f32.mrf.mxu0
        %v1108 = vadd.f32 %v1011, %v1107
        %v1109 = vpop.f32.mrf.mxu0
        %v1110 = vadd.f32 %v1011, %v1109
        %1111 = vmatmul.bf16.gmra.mxu0 %v1043
        %v1112 = vpop.f32.mrf.mxu0
        %v1113 = vadd.f32 %v1011, %v1112
        %v1114 = vpop.f32.mrf.mxu0
        %v1115 = vadd.f32 %v1011, %v1114
        %1116 = vmatmul.bf16.gmra.mxu0 %v1045
        %v1117 = vpop.f32.mrf.mxu0
        %v1118 = vadd.f32 %v1011, %v1117
        %v1119 = vpop.f32.mrf.mxu0
        %v1120 = vadd.f32 %v1011, %v1119
        %1121 = vmatmul.bf16.gmra.mxu0 %v1047
        %v1122 = vpop.f32.mrf.mxu0
        %v1123 = vadd.f32 %v1011, %v1122
        %v1124 = vpop.f32.mrf.mxu0
        %v1125 = vadd.f32 %v1011, %v1124
        %1126 = vmatmul.bf16.gmra.mxu0 %v1049
        %v1127 = vpop.f32.mrf.mxu0
        %v1128 = vadd.f32 %v1011, %v1127
        %v1129 = vpop.f32.mrf.mxu0
        %1130 = vdwg.mxu0
        %v1131 = vmax.f32 %v1068, 0.0
        %v1132 = vmax.f32 %v1070, 0.0
        %v1133 = vmax.f32 %v1073, 0.0
        %v1134 = vmax.f32 %v1075, 0.0
        %v1135 = vmax.f32 %v1078, 0.0
        %v1136 = vmax.f32 %v1080, 0.0
        %v1137 = vmax.f32 %v1083, 0.0
        %v1138 = vmax.f32 %v1085, 0.0
        %v1139 = vmax.f32 %v1088, 0.0
        %v1140 = vmax.f32 %v1090, 0.0
        %v1141 = vmax.f32 %v1093, 0.0
        %v1142 = vmax.f32 %v1095, 0.0
        %v1143 = vmax.f32 %v1098, 0.0
        %v1144 = vmax.f32 %v1100, 0.0
        %v1145 = vmax.f32 %v1103, 0.0
        %v1146 = vmax.f32 %v1105, 0.0
        %v1147 = vmax.f32 %v1108, 0.0
        %v1148 = vmax.f32 %v1110, 0.0
        %v1149 = vmax.f32 %v1113, 0.0
        %v1150 = vmax.f32 %v1115, 0.0
        %v1151 = vmax.f32 %v1118, 0.0
        %v1152 = vmax.f32 %v1120, 0.0
        %v1153 = vmax.f32 %v1123, 0.0
        %v1154 = vmax.f32 %v1125, 0.0
        %v1155 = vmax.f32 %v1128, 0.0
        %vm1179 = vcmask 1046528
        %v1180 = vrot.slane %v1131, 1
        %v1181 = vrot.slane %v1132, 1
        %v1182 = vsel %vm1179, %v1180, %v1181
        %v1183 = vrot.slane %v1133, 1
        %v1184 = vsel %vm1179, %v1181, %v1183
        %v1185 = vrot.slane %v1134, 1
        %v1186 = vsel %vm1179, %v1183, %v1185
        %v1187 = vrot.slane %v1135, 1
        %v1188 = vsel %vm1179, %v1185, %v1187
        %v1189 = vrot.slane %v1136, 1
        %v1190 = vsel %vm1179, %v1187, %v1189
        %v1191 = vrot.slane %v1137, 1
        %v1192 = vsel %vm1179, %v1189, %v1191
        %v1193 = vrot.slane %v1138, 1
        %v1194 = vsel %vm1179, %v1191, %v1193
        %v1195 = vrot.slane %v1139, 1
        %v1196 = vsel %vm1179, %v1193, %v1195
        %v1197 = vrot.slane %v1140, 1
        %v1198 = vsel %vm1179, %v1195, %v1197
        %v1199 = vrot.slane %v1141, 1
        %v1200 = vsel %vm1179, %v1197, %v1199
        %v1201 = vrot.slane %v1142, 1
        %v1202 = vsel %vm1179, %v1199, %v1201
        %v1203 = vrot.slane %v1143, 1
        %v1204 = vsel %vm1179, %v1201, %v1203
        %v1205 = vrot.slane %v1144, 1
        %v1206 = vsel %vm1179, %v1203, %v1205
        %v1207 = vrot.slane %v1145, 1
        %v1208 = vsel %vm1179, %v1205, %v1207
        %v1209 = vrot.slane %v1146, 1
        %v1210 = vsel %vm1179, %v1207, %v1209
        %v1211 = vrot.slane %v1147, 1
        %v1212 = vsel %vm1179, %v1209, %v1211
        %v1213 = vrot.slane %v1148, 1
        %v1214 = vsel %vm1179, %v1211, %v1213
        %v1215 = vrot.slane %v1149, 1
        %v1216 = vsel %vm1179, %v1213, %v1215
        %v1217 = vrot.slane %v1150, 1
        %v1218 = vsel %vm1179, %v1215, %v1217
        %v1219 = vrot.slane %v1151, 1
        %v1220 = vsel %vm1179, %v1217, %v1219
        %v1221 = vrot.slane %v1152, 1
        %v1222 = vsel %vm1179, %v1219, %v1221
        %v1223 = vrot.slane %v1153, 1
        %v1224 = vsel %vm1179, %v1221, %v1223
        %v1248 = vmax.f32 %v1131, %v1182
        %v1249 = vmax.f32 %v1132, %v1184
        %v1250 = vmax.f32 %v1133, %v1186
        %v1251 = vmax.f32 %v1134, %v1188
        %v1252 = vmax.f32 %v1135, %v1190
        %v1253 = vmax.f32 %v1136, %v1192
        %v1254 = vmax.f32 %v1137, %v1194
        %v1255 = vmax.f32 %v1138, %v1196
        %v1256 = vmax.f32 %v1139, %v1198
        %v1257 = vmax.f32 %v1140, %v1200
        %v1258 = vmax.f32 %v1141, %v1202
        %v1259 = vmax.f32 %v1142, %v1204
        %v1260 = vmax.f32 %v1143, %v1206
        %v1261 = vmax.f32 %v1144, %v1208
        %v1262 = vmax.f32 %v1145, %v1210
        %v1263 = vmax.f32 %v1146, %v1212
        %v1264 = vmax.f32 %v1147, %v1214
        %v1265 = vmax.f32 %v1148, %v1216
        %v1266 = vmax.f32 %v1149, %v1218
        %v1267 = vmax.f32 %v1150, %v1220
        %v1268 = vmax.f32 %v1151, %v1222
        %v1269 = vmax.f32 %v1152, %v1224
        %v1270 = vmax.f32 %v1153, %v1223
        %v1273 = vrot.slane %v1154, 1
        %v1274 = vsel %vm1179, %v1223, %v1273
        %v1275 = vrot.slane %v1155, 1
        %v1276 = vsel %vm1179, %v1273, %v1275
        %v1280 = vmax.f32 %v1153, %v1274
        %v1281 = vmax.f32 %v1154, %v1276
        %v1282 = vmax.f32 %v1155, %v1275
        %v1283 = vmax.f32 %v1248, %v1250
        %v1284 = vmax.f32 %v1249, %v1251
        %v1285 = vmax.f32 %v1250, %v1252
        %v1286 = vmax.f32 %v1251, %v1253
        %v1287 = vmax.f32 %v1252, %v1254
        %v1288 = vmax.f32 %v1253, %v1255
        %v1289 = vmax.f32 %v1254, %v1256
        %v1290 = vmax.f32 %v1255, %v1257
        %v1291 = vmax.f32 %v1256, %v1258
        %v1292 = vmax.f32 %v1257, %v1259
        %v1293 = vmax.f32 %v1258, %v1260
        %v1294 = vmax.f32 %v1259, %v1261
        %v1295 = vmax.f32 %v1260, %v1262
        %v1296 = vmax.f32 %v1261, %v1263
        %v1297 = vmax.f32 %v1262, %v1264
        %v1298 = vmax.f32 %v1263, %v1265
        %v1299 = vmax.f32 %v1264, %v1266
        %v1300 = vmax.f32 %v1265, %v1267
        %v1301 = vmax.f32 %v1266, %v1268
        %v1302 = vmax.f32 %v1267, %v1269
        %v1303 = vmax.f32 %v1268, %v1280
        %v1304 = vmax.f32 %v1269, %v1281
        %v1305 = vmax.f32 %v1270, %v1282
        %v1306 = vpack.c.bf16 %v1283, %v1283
        %v1307 = vpack.c.bf16 %v1284, %v1284
        %v1308 = vpack.c.bf16 %v1285, %v1285
        %v1309 = vpack.c.bf16 %v1286, %v1286
        %v1310 = vpack.c.bf16 %v1287, %v1287
        %v1311 = vpack.c.bf16 %v1288, %v1288
        %v1312 = vpack.c.bf16 %v1289, %v1289
        %v1313 = vpack.c.bf16 %v1290, %v1290
        %v1314 = vpack.c.bf16 %v1291, %v1291
        %v1315 = vpack.c.bf16 %v1292, %v1292
        %v1316 = vpack.c.bf16 %v1293, %v1293
        %v1317 = vpack.c.bf16 %v1294, %v1294
        %v1318 = vpack.c.bf16 %v1295, %v1295
        %v1319 = vpack.c.bf16 %v1296, %v1296
        %v1320 = vpack.c.bf16 %v1297, %v1297
        %v1321 = vpack.c.bf16 %v1298, %v1298
        %v1322 = vpack.c.bf16 %v1299, %v1299
        %v1323 = vpack.c.bf16 %v1300, %v1300
        %v1324 = vpack.c.bf16 %v1301, %v1301
        %v1325 = vpack.c.bf16 %v1302, %v1302
        %v1326 = vpack.c.bf16 %v1303, %v1303
        %v1327 = vpack.c.bf16 %v1304, %v1304
        %v1328 = vpack.c.bf16 %v1305, %v1305
        %v1343 = vunpack.c.l.b16 %v1306
        %v1344 = vunpack.c.l.b16 %v1307
        %v1345 = vunpack.c.l.b16 %v1308
        %v1346 = vunpack.c.l.b16 %v1309
        %v1347 = vunpack.c.l.b16 %v1310
        %v1348 = vunpack.c.l.b16 %v1311
        %v1349 = vunpack.c.l.b16 %v1312
        %v1350 = vunpack.c.l.b16 %v1313
        %v1351 = vunpack.c.l.b16 %v1314
        %v1352 = vunpack.c.l.b16 %v1315
        %v1353 = vunpack.c.l.b16 %v1316
        %v1354 = vunpack.c.l.b16 %v1317
        %v1355 = vunpack.c.l.b16 %v1318
        %v1356 = vunpack.c.l.b16 %v1319
        %v1357 = vpack.c.b16 %v1344, %v1343
        %v1358 = vpack.c.b16 %v1346, %v1345
        %v1359 = vpack.c.b16 %v1348, %v1347
        %v1360 = vpack.c.b16 %v1350, %v1349
        %v1361 = vpack.c.b16 %v1352, %v1351
        %v1362 = vpack.c.b16 %v1354, %v1353
        %v1363 = vpack.c.b16 %v1356, %v1355
        %v1365 = vunpack.c.l.b16 %v1320
        %v1366 = vpack.c.b16 %v1365, %v1365
        %v1367 = vrot.slane %v1357, 1
        %v1368 = vrot.slane %v1358, 1
        %v1369 = vsel %vm519, %v1367, %v1368
        %v1370 = vrot.slane %v1359, 1
        %v1371 = vsel %vm519, %v1368, %v1370
        %v1372 = vrot.slane %v1360, 1
        %v1373 = vsel %vm519, %v1370, %v1372
        %v1374 = vrot.slane %v1361, 1
        %v1375 = vsel %vm519, %v1372, %v1374
        %v1376 = vrot.slane %v1362, 1
        %v1377 = vsel %vm519, %v1374, %v1376
        %v1378 = vrot.slane %v1363, 1
        %v1379 = vsel %vm519, %v1376, %v1378
        %v1380 = vrot.slane %v1366, 1
        %v1381 = vsel %vm519, %v1378, %v1380
        %1382 = vrot.lane.b32.xlu0 %v1369, 16
        %v1383 = vpop.permute.xlu0 %1382
        %1384 = vrot.lane.b32.xlu0 %v1371, 16
        %v1385 = vpop.permute.xlu0 %1384
        %1386 = vrot.lane.b32.xlu0 %v1373, 16
        %v1387 = vpop.permute.xlu0 %1386
        %1388 = vrot.lane.b32.xlu0 %v1375, 16
        %v1389 = vpop.permute.xlu0 %1388
        %1390 = vrot.lane.b32.xlu0 %v1377, 16
        %v1391 = vpop.permute.xlu0 %1390
        %1392 = vrot.lane.b32.xlu0 %v1379, 16
        %v1393 = vpop.permute.xlu0 %1392
        %1394 = vrot.lane.b32.xlu0 %v1381, 16
        %v1395 = vpop.permute.xlu0 %1394
        %vm1396 = vcmask 1045504
        %v1397 = vrot.slane %v1357, 2
        %v1398 = vrot.slane %v1358, 2
        %v1399 = vsel %vm1396, %v1397, %v1398
        %v1400 = vrot.slane %v1359, 2
        %v1401 = vsel %vm1396, %v1398, %v1400
        %v1402 = vrot.slane %v1360, 2
        %v1403 = vsel %vm1396, %v1400, %v1402
        %v1404 = vrot.slane %v1361, 2
        %v1405 = vsel %vm1396, %v1402, %v1404
        %v1406 = vrot.slane %v1362, 2
        %v1407 = vsel %vm1396, %v1404, %v1406
        %v1408 = vrot.slane %v1363, 2
        %v1409 = vsel %vm1396, %v1406, %v1408
        %v1410 = vrot.slane %v1366, 2
        %v1411 = vsel %vm1396, %v1408, %v1410
        %1412 = vrot.lane.b32.xlu0 %v1399, 32
        %v1413 = vpop.permute.xlu0 %1412
        %1414 = vrot.lane.b32.xlu0 %v1401, 32
        %v1415 = vpop.permute.xlu0 %1414
        %1416 = vrot.lane.b32.xlu0 %v1403, 32
        %v1417 = vpop.permute.xlu0 %1416
        %1418 = vrot.lane.b32.xlu0 %v1405, 32
        %v1419 = vpop.permute.xlu0 %1418
        %1420 = vrot.lane.b32.xlu0 %v1407, 32
        %v1421 = vpop.permute.xlu0 %1420
        %1422 = vrot.lane.b32.xlu0 %v1409, 32
        %v1423 = vpop.permute.xlu0 %1422
        %1424 = vrot.lane.b32.xlu0 %v1411, 32
        %v1425 = vpop.permute.xlu0 %1424
        %v1429 = vunpack.c.l.b16 %v1321
        %v1430 = vunpack.c.l.b16 %v1322
        %v1431 = vunpack.c.l.b16 %v1323
        %v1432 = vpack.c.b16 %v1429, %v1365
        %v1433 = vpack.c.b16 %v1431, %v1430
        %1434 = vrot.lane.b32.xlu0 %v1359, 48
        %v1435 = vpop.permute.xlu0 %1434
        %1436 = vrot.lane.b32.xlu0 %v1360, 48
        %v1437 = vpop.permute.xlu0 %1436
        %1438 = vrot.lane.b32.xlu0 %v1361, 48
        %v1439 = vpop.permute.xlu0 %1438
        %1440 = vrot.lane.b32.xlu0 %v1362, 48
        %v1441 = vpop.permute.xlu0 %1440
        %1442 = vrot.lane.b32.xlu0 %v1363, 48
        %v1443 = vpop.permute.xlu0 %1442
        %1444 = vrot.lane.b32.xlu0 %v1432, 48
        %v1445 = vpop.permute.xlu0 %1444
        %1446 = vrot.lane.b32.xlu0 %v1433, 48
        %v1447 = vpop.permute.xlu0 %1446
        %v1449 = vunpack.c.l.b16 %v1324
        %v1450 = vpack.c.b16 %v1449, %v1449
        %v1451 = vrot.slane %v1432, 1
        %v1452 = vsel %vm519, %v1378, %v1451
        %v1453 = vrot.slane %v1433, 1
        %v1454 = vsel %vm519, %v1451, %v1453
        %v1455 = vrot.slane %v1450, 1
        %v1456 = vsel %vm519, %v1453, %v1455
        %1457 = vrot.lane.b32.xlu0 %v1373, 64
        %v1458 = vpop.permute.xlu0 %1457
        %1459 = vrot.lane.b32.xlu0 %v1375, 64
        %v1460 = vpop.permute.xlu0 %1459
        %1461 = vrot.lane.b32.xlu0 %v1377, 64
        %v1462 = vpop.permute.xlu0 %1461
        %1463 = vrot.lane.b32.xlu0 %v1379, 64
        %v1464 = vpop.permute.xlu0 %1463
        %1465 = vrot.lane.b32.xlu0 %v1452, 64
        %v1466 = vpop.permute.xlu0 %1465
        %1467 = vrot.lane.b32.xlu0 %v1454, 64
        %v1468 = vpop.permute.xlu0 %1467
        %1469 = vrot.lane.b32.xlu0 %v1456, 64
        %v1470 = vpop.permute.xlu0 %1469
        %v1471 = vrot.slane %v1432, 2
        %v1472 = vsel %vm1396, %v1408, %v1471
        %v1473 = vrot.slane %v1433, 2
        %v1474 = vsel %vm1396, %v1471, %v1473
        %v1475 = vrot.slane %v1450, 2
        %v1476 = vsel %vm1396, %v1473, %v1475
        %1477 = vrot.lane.b32.xlu0 %v1403, 80
        %v1478 = vpop.permute.xlu0 %1477
        %1479 = vrot.lane.b32.xlu0 %v1405, 80
        %v1480 = vpop.permute.xlu0 %1479
        %1481 = vrot.lane.b32.xlu0 %v1407, 80
        %v1482 = vpop.permute.xlu0 %1481
        %1483 = vrot.lane.b32.xlu0 %v1409, 80
        %v1484 = vpop.permute.xlu0 %1483
        %1485 = vrot.lane.b32.xlu0 %v1472, 80
        %v1486 = vpop.permute.xlu0 %1485
        %1487 = vrot.lane.b32.xlu0 %v1474, 80
        %v1488 = vpop.permute.xlu0 %1487
        %1489 = vrot.lane.b32.xlu0 %v1476, 80
        %v1490 = vpop.permute.xlu0 %1489
        %v1494 = vunpack.c.l.b16 %v1325
        %v1495 = vunpack.c.l.b16 %v1326
        %v1496 = vunpack.c.l.b16 %v1327
        %v1497 = vpack.c.b16 %v1494, %v1449
        %v1498 = vpack.c.b16 %v1496, %v1495
        %1499 = vrot.lane.b32.xlu0 %v1361, 96
        %v1500 = vpop.permute.xlu0 %1499
        %1501 = vrot.lane.b32.xlu0 %v1362, 96
        %v1502 = vpop.permute.xlu0 %1501
        %1503 = vrot.lane.b32.xlu0 %v1363, 96
        %v1504 = vpop.permute.xlu0 %1503
        %1505 = vrot.lane.b32.xlu0 %v1432, 96
        %v1506 = vpop.permute.xlu0 %1505
        %1507 = vrot.lane.b32.xlu0 %v1433, 96
        %v1508 = vpop.permute.xlu0 %1507
        %1509 = vrot.lane.b32.xlu0 %v1497, 96
        %v1510 = vpop.permute.xlu0 %1509
        %1511 = vrot.lane.b32.xlu0 %v1498, 96
        %v1512 = vpop.permute.xlu0 %1511
        %v1514 = vunpack.c.l.b16 %v1328
        %v1515 = vpack.c.b16 %v1514, %v1514
        %v1516 = vrot.slane %v1497, 1
        %v1517 = vsel %vm519, %v1453, %v1516
        %v1518 = vrot.slane %v1498, 1
        %v1519 = vsel %vm519, %v1516, %v1518
        %v1520 = vrot.slane %v1515, 1
        %v1521 = vsel %vm519, %v1518, %v1520
        %1522 = vrot.lane.b32.xlu0 %v1377, 112
        %v1523 = vpop.permute.xlu0 %1522
        %1524 = vrot.lane.b32.xlu0 %v1379, 112
        %v1525 = vpop.permute.xlu0 %1524
        %1526 = vrot.lane.b32.xlu0 %v1452, 112
        %v1527 = vpop.permute.xlu0 %1526
        %1528 = vrot.lane.b32.xlu0 %v1454, 112
        %v1529 = vpop.permute.xlu0 %1528
        %1530 = vrot.lane.b32.xlu0 %v1517, 112
        %v1531 = vpop.permute.xlu0 %1530
        %1532 = vrot.lane.b32.xlu0 %v1519, 112
        %v1533 = vpop.permute.xlu0 %1532
        %1534 = vrot.lane.b32.xlu0 %v1521, 112
        %v1535 = vpop.permute.xlu0 %1534
        %v1536 = vrot.slane %v1497, 2
        %v1537 = vsel %vm1396, %v1473, %v1536
        %v1538 = vrot.slane %v1498, 2
        %v1539 = vsel %vm1396, %v1536, %v1538
        %v1540 = vrot.slane %v1515, 2
        %v1541 = vsel %vm1396, %v1538, %v1540
        %vm1542 = vcmask 130048
        %v1545 = vsel %vm1542, %v1357, %v1383
        %v1548 = vsel %vm1542, %v1358, %v1385
        %v1551 = vsel %vm1542, %v1359, %v1387
        %v1554 = vsel %vm1542, %v1360, %v1389
        %v1557 = vsel %vm1542, %v1361, %v1391
        %v1560 = vsel %vm1542, %v1362, %v1393
        %v1563 = vsel %vm1542, %v1363, %v1395
        %vm1564 = vcmask 261120
        %v1566 = vsel %vm1564, %v1545, %v1413
        %v1568 = vsel %vm1564, %v1548, %v1415
        %v1570 = vsel %vm1564, %v1551, %v1417
        %v1572 = vsel %vm1564, %v1554, %v1419
        %v1574 = vsel %vm1564, %v1557, %v1421
        %v1576 = vsel %vm1564, %v1560, %v1423
        %v1578 = vsel %vm1564, %v1563, %v1425
        %vm1579 = vcmask 392192
        %v1581 = vsel %vm1579, %v1566, %v1435
        %v1583 = vsel %vm1579, %v1568, %v1437
        %v1585 = vsel %vm1579, %v1570, %v1439
        %v1587 = vsel %vm1579, %v1572, %v1441
        %v1589 = vsel %vm1579, %v1574, %v1443
        %v1591 = vsel %vm1579, %v1576, %v1445
        %v1593 = vsel %vm1579, %v1578, %v1447
        %vm1594 = vcmask 523264
        %v1596 = vsel %vm1594, %v1581, %v1458
        %v1598 = vsel %vm1594, %v1583, %v1460
        %v1600 = vsel %vm1594, %v1585, %v1462
        %v1602 = vsel %vm1594, %v1587, %v1464
        %v1604 = vsel %vm1594, %v1589, %v1466
        %v1606 = vsel %vm1594, %v1591, %v1468
        %v1608 = vsel %vm1594, %v1593, %v1470
        %vm1609 = vcmask 654336
        %v1611 = vsel %vm1609, %v1596, %v1478
        %v1613 = vsel %vm1609, %v1598, %v1480
        %v1615 = vsel %vm1609, %v1600, %v1482
        %v1617 = vsel %vm1609, %v1602, %v1484
        %v1619 = vsel %vm1609, %v1604, %v1486
        %v1621 = vsel %vm1609, %v1606, %v1488
        %v1623 = vsel %vm1609, %v1608, %v1490
        %vm1624 = vcmask 785408
        %v1626 = vsel %vm1624, %v1611, %v1500
        %v1628 = vsel %vm1624, %v1613, %v1502
        %v1630 = vsel %vm1624, %v1615, %v1504
        %v1632 = vsel %vm1624, %v1617, %v1506
        %v1634 = vsel %vm1624, %v1619, %v1508
        %v1636 = vsel %vm1624, %v1621, %v1510
        %v1638 = vsel %vm1624, %v1623, %v1512
        %vm1639 = vcmask 916480
        %v1641 = vsel %vm1639, %v1626, %v1523
        %v1644 = vsel %vm1639, %v1628, %v1525
        %v1647 = vsel %vm1639, %v1630, %v1527
        %v1650 = vsel %vm1639, %v1632, %v1529
        %v1653 = vsel %vm1639, %v1634, %v1531
        %v1656 = vsel %vm1639, %v1636, %v1533
        %v1659 = vsel %vm1639, %v1638, %v1535
        %v1661 = vld [vmem:[%s3] sm:$0xf]
        %v1662 = vld [vmem:[%s3 + $0x4] sm:$0xf]
        %v1663 = vld [vmem:[%s3 + $0x8] sm:$0xf]
        %v1664 = vld [vmem:[%s3 + $0xc] sm:$0xf]
        %v1665 = vld [vmem:[%s3 + $0x10] sm:$0xf]
        %v1666 = vld [vmem:[%s3 + $0x14] sm:$0xf]
        %v1667 = vld [vmem:[%s3 + $0x18] sm:$0xf]
        %v1668 = vld [vmem:[%s3 + $0x1c] sm:$0xf]
        %v1669 = vld [vmem:[%s3 + $0x20] sm:$0xf]
        %v1670 = vld [vmem:[%s3 + $0x24] sm:$0xf]
        %v1671 = vld [vmem:[%s3 + $0x28] sm:$0xf]
        %v1672 = vld [vmem:[%s3 + $0x2c] sm:$0xf]
        %v1673 = vld [vmem:[%s3 + $0x30] sm:$0xf]
        %v1674 = vld [vmem:[%s3 + $0x34] sm:$0xf]
        %v1675 = vld [vmem:[%s3 + $0x38] sm:$0xf]
        %v1676 = vld [vmem:[%s3 + $0x3c] sm:$0xf]
        %v1677 = vld [vmem:[%s3 + $0x40] sm:$0xf]
        %v1678 = vld [vmem:[%s3 + $0x44] sm:$0xf]
        %v1679 = vld [vmem:[%s4] sm:$0x1]
        %v1681 = vperm.slane %v1679, 0
        %v1701 = vunpack.c.l.b16 %v1661
        %v1702 = vunpack.c.l.b16 %v1662
        %v1703 = vunpack.c.l.b16 %v1663
        %v1704 = vunpack.c.l.b16 %v1664
        %v1705 = vunpack.c.l.b16 %v1665
        %v1706 = vunpack.c.l.b16 %v1666
        %v1707 = vunpack.c.l.b16 %v1667
        %v1708 = vunpack.c.l.b16 %v1668
        %v1709 = vunpack.c.l.b16 %v1669
        %v1710 = vunpack.c.l.b16 %v1670
        %v1711 = vunpack.c.l.b16 %v1671
        %v1712 = vunpack.c.l.b16 %v1672
        %v1713 = vunpack.c.l.b16 %v1673
        %v1714 = vunpack.c.l.b16 %v1674
        %v1715 = vunpack.c.l.b16 %v1675
        %v1716 = vunpack.c.l.b16 %v1676
        %v1717 = vunpack.c.l.b16 %v1677
        %v1718 = vunpack.c.l.b16 %v1678
        %v1719 = vpack.c.b16 %v1702, %v1701
        %v1720 = vpack.c.b16 %v1704, %v1703
        %v1721 = vpack.c.b16 %v1706, %v1705
        %v1722 = vpack.c.b16 %v1708, %v1707
        %v1723 = vpack.c.b16 %v1710, %v1709
        %v1724 = vpack.c.b16 %v1712, %v1711
        %v1725 = vpack.c.b16 %v1714, %v1713
        %v1726 = vpack.c.b16 %v1716, %v1715
        %v1727 = vpack.c.b16 %v1718, %v1717
        %v1738 = vsel %vm1542, %v1407, 0
        %v1741 = vsel %vm1542, %v1409, 0
        %v1744 = vsel %vm1542, %v1472, 0
        %v1747 = vsel %vm1542, %v1474, 0
        %v1750 = vsel %vm1542, %v1537, 0
        %v1753 = vsel %vm1542, %v1539, 0
        %v1756 = vsel %vm1542, %v1541, 0
        %1758 = vmatpush.bf16.msra.mxu0 %v1726
        %1759 = vmatpush.bf16.msra.mxu0 %v1725
        %1760 = vmatpush.bf16.msra.mxu0 %v1724
        %1761 = vmatpush.bf16.msra.mxu0 %v1723
        %1762 = vmatpush.bf16.msra.mxu0 %v1722
        %1763 = vmatpush.bf16.msra.mxu0 %v1721
        %1764 = vmatpush.bf16.msra.mxu0 %v1720
        %1765 = vmatpush.bf16.msra.mxu0 %v1719
        %1766 = vmatmul.bf16.gmra.mxu0 %v1641
        %v1767 = vpop.f32.mrf.mxu0
        %v1768 = vadd.f32 %v1681, %v1767
        %v1769 = vpop.f32.mrf.mxu0
        %v1770 = vadd.f32 %v1681, %v1769
        %1771 = vmatmul.bf16.gmra.mxu0 %v1644
        %v1772 = vpop.f32.mrf.mxu0
        %v1773 = vpop.f32.mrf.mxu0
        %1774 = vmatmul.bf16.gmra.mxu0 %v1647
        %v1775 = vpop.f32.mrf.mxu0
        %v1776 = vadd.f32 %v1681, %v1775
        %v1777 = vpop.f32.mrf.mxu0
        %v1778 = vadd.f32 %v1681, %v1777
        %1779 = vmatmul.bf16.gmra.mxu0 %v1650
        %v1780 = vpop.f32.mrf.mxu0
        %v1781 = vpop.f32.mrf.mxu0
        %1782 = vmatmul.bf16.gmra.mxu0 %v1653
        %v1783 = vpop.f32.mrf.mxu0
        %v1784 = vadd.f32 %v1681, %v1783
        %v1785 = vpop.f32.mrf.mxu0
        %1786 = vmatmul.bf16.gmra.mxu0 %v1656
        %v1787 = vpop.f32.mrf.mxu0
        %v1788 = vpop.f32.mrf.mxu0
        %1789 = vmatmul.bf16.gmra.mxu0 %v1659
        %v1790 = vpop.f32.mrf.mxu0
        %v1791 = vadd.f32 %v1681, %v1790
        %v1792 = vpop.f32.mrf.mxu0
        %1793 = vdwg.mxu0
        %1794 = vmatpush.bf16.msra.mxu0 0
        %1795 = vmatpush.bf16.msra.mxu0 0
        %1796 = vmatpush.bf16.msra.mxu0 0
        %1797 = vmatpush.bf16.msra.mxu0 0
        %1798 = vmatpush.bf16.msra.mxu0 0
        %1799 = vmatpush.bf16.msra.mxu0 0
        %1800 = vmatpush.bf16.msra.mxu0 0
        %1801 = vmatpush.bf16.msra.mxu0 %v1727
        %1802 = vmatmul.bf16.gmra.mxu0 %v1738
        %v1803 = vpop.f32.mrf.mxu0
        %v1804 = vadd.f32 %v1768, %v1803
        %v1805 = vpop.f32.mrf.mxu0
        %v1806 = vadd.f32 %v1770, %v1805
        %1807 = vmatmul.bf16.gmra.mxu0 %v1741
        %v1808 = vpop.f32.mrf.mxu0
        %v1809 = vpop.f32.mrf.mxu0
        %1810 = vmatmul.bf16.gmra.mxu0 %v1744
        %v1811 = vpop.f32.mrf.mxu0
        %v1812 = vadd.f32 %v1776, %v1811
        %v1813 = vpop.f32.mrf.mxu0
        %v1814 = vadd.f32 %v1778, %v1813
        %1815 = vmatmul.bf16.gmra.mxu0 %v1747
        %v1816 = vpop.f32.mrf.mxu0
        %v1817 = vpop.f32.mrf.mxu0
        %1818 = vmatmul.bf16.gmra.mxu0 %v1750
        %v1819 = vpop.f32.mrf.mxu0
        %v1820 = vadd.f32 %v1784, %v1819
        %v1821 = vpop.f32.mrf.mxu0
        %1822 = vmatmul.bf16.gmra.mxu0 %v1753
        %v1823 = vpop.f32.mrf.mxu0
        %v1824 = vpop.f32.mrf.mxu0
        %1825 = vmatmul.bf16.gmra.mxu0 %v1756
        %v1826 = vpop.f32.mrf.mxu0
        %v1827 = vadd.f32 %v1791, %v1826
        %v1828 = vpop.f32.mrf.mxu0
        %1829 = vdwg.mxu0
        %v1830 = vmax.f32 %v1804, 0.0
        %v1831 = vmax.f32 %v1806, 0.0
        %v1832 = vmax.f32 %v1812, 0.0
        %v1833 = vmax.f32 %v1814, 0.0
        %v1834 = vmax.f32 %v1820, 0.0
        %v1835 = vmax.f32 %v1827, 0.0
        %v1839 = vrot.slane %v1830, 2
        %v1840 = vrot.slane %v1831, 2
        %v1841 = vsel %vm1052, %v1839, %v1840
        %v1842 = vrot.slane %v1834, 2
        %v1845 = vmax.f32 %v1830, %v1841
        %v1846 = vmax.f32 %v1834, %v1842
        %v1850 = vrot.slane %v1832, 2
        %v1851 = vrot.slane %v1833, 2
        %v1852 = vsel %vm1052, %v1850, %v1851
        %v1853 = vrot.slane %v1835, 2
        %v1856 = vmax.f32 %v1832, %v1852
        %v1857 = vmax.f32 %v1835, %v1853
        %v1858 = vmax.f32 %v1845, %v1856
        %v1859 = vmax.f32 %v1846, %v1857
        %v1860 = vpack.c.bf16 %v1858, %v1858
        %v1861 = vpack.c.bf16 %v1859, %v1859
        %v1863 = vunpack.c.l.b16 %v1860
        %v1864 = vpack.c.b16 %v1863, %v1863
        %v1865 = vrot.slane %v1864, 2
        %1866 = vrot.lane.b32.xlu0 %v1865, 32
        %v1867 = vpop.permute.xlu0 %1866
        %v1869 = vunpack.c.l.b16 %v1861
        %v1870 = vpack.c.b16 %v1869, %v1869
        %1871 = vrot.lane.b32.xlu0 %v1870, 64
        %v1872 = vpop.permute.xlu0 %1871
        %v1873 = vrot.slane %v1870, 2
        %1874 = vrot.lane.b32.xlu0 %v1873, 96
        %v1875 = vpop.permute.xlu0 %1874
        %v1878 = vsel %vm1564, %v1860, %v1867
        %v1880 = vsel %vm1594, %v1878, %v1872
        %v1882 = vsel %vm1624, %v1880, %v1875
        %v1884 = vld [vmem:[%s5] sm:$0xf]
        %v1885 = vld [vmem:[%s5 + $0x4] sm:$0xf]
        %v1886 = vld [vmem:[%s5 + $0x8] sm:$0xf]
        %v1887 = vld [vmem:[%s5 + $0xc] sm:$0xf]
        %v1888 = vld [vmem:[%s5 + $0x10] sm:$0xf]
        %v1889 = vld [vmem:[%s5 + $0x14] sm:$0xf]
        %v1890 = vld [vmem:[%s5 + $0x18] sm:$0xf]
        %v1891 = vld [vmem:[%s5 + $0x1c] sm:$0xf]
        %v1892 = vld [vmem:[%s5 + $0x20] sm:$0xf]
        %v1893 = vld [vmem:[%s5 + $0x24] sm:$0xf]
        %v1894 = vld [vmem:[%s5 + $0x28] sm:$0xf]
        %v1895 = vld [vmem:[%s5 + $0x2c] sm:$0xf]
        %v1896 = vld [vmem:[%s5 + $0x30] sm:$0xf]
        %v1897 = vld [vmem:[%s5 + $0x34] sm:$0xf]
        %v1898 = vld [vmem:[%s5 + $0x38] sm:$0xf]
        %v1899 = vld [vmem:[%s5 + $0x3c] sm:$0xf]
        %v1900 = vld [vmem:[%s6] sm:$0x1]
        %v1917 = vunpack.c.l.b16 %v1884
        %v1918 = vunpack.c.l.b16 %v1885
        %v1919 = vunpack.c.l.b16 %v1886
        %v1920 = vunpack.c.l.b16 %v1887
        %v1921 = vunpack.c.l.b16 %v1888
        %v1922 = vunpack.c.l.b16 %v1889
        %v1923 = vunpack.c.l.b16 %v1890
        %v1924 = vunpack.c.l.b16 %v1891
        %v1925 = vunpack.c.l.b16 %v1892
        %v1926 = vunpack.c.l.b16 %v1893
        %v1927 = vunpack.c.l.b16 %v1894
        %v1928 = vunpack.c.l.b16 %v1895
        %v1929 = vunpack.c.l.b16 %v1896
        %v1930 = vunpack.c.l.b16 %v1897
        %v1931 = vunpack.c.l.b16 %v1898
        %v1932 = vunpack.c.l.b16 %v1899
        %v1933 = vpack.c.b16 %v1918, %v1917
        %v1934 = vpack.c.b16 %v1920, %v1919
        %v1935 = vpack.c.b16 %v1922, %v1921
        %v1936 = vpack.c.b16 %v1924, %v1923
        %v1937 = vpack.c.b16 %v1926, %v1925
        %v1938 = vpack.c.b16 %v1928, %v1927
        %v1939 = vpack.c.b16 %v1930, %v1929
        %v1940 = vpack.c.b16 %v1932, %v1931
        %1949 = vmatpush.bf16.msra.mxu0 %v1940
        %1950 = vmatpush.bf16.msra.mxu0 %v1939
        %1951 = vmatpush.bf16.msra.mxu0 %v1938
        %1952 = vmatpush.bf16.msra.mxu0 %v1937
        %1953 = vmatpush.bf16.msra.mxu0 %v1936
        %1954 = vmatpush.bf16.msra.mxu0 %v1935
        %1955 = vmatpush.bf16.msra.mxu0 %v1934
        %1956 = vmatpush.bf16.msra.mxu0 %v1933
        %1957 = vmatmul.bf16.gmra.mxu0 %v1882
        %v1958 = vpop.f32.mrf.mxu0
        %v1959 = vadd.f32 %v1900, %v1958
        %v1960 = vpop.f32.mrf.mxu0
        %1961 = vdwg.mxu0
        %1962 = vst [vmem:[%s270] sm:$0x1] %v1959
        %s1963 = sand.u32 %s181, 1
        %s1964 = scalar_lea.sflag [#allocation3], %s1963
        %s1965 = sand.u32 %s181, 1
        %s1966 = scalar_lea.vmem [#allocation2], %s1965
        // Predicated region
        $region49: #{cnn_forward.1} parent=47 // pred_check
          %p1967 = pneg %p191
        $region50: #{cnn_forward.1} parent=47 // pred_check_branch
          %1969 = sbr.rel (%p1967) target = $region52
        $region51: #{cnn_forward.1} parent=47 // pred_region
          %1971 = vsyncadd %s1964, 0
          %s1972 = scalar_lea.hbm %s7, %s21
          %s1974 = sshll.u32 %s1966, 4
          %s1975 = int_to_ptr.vmem [resolvable:$true] %s1974
          %s1976 = sshll.u32 %s1972, 4
          %s1977 = int_to_ptr.hbm [resolvable:$true] %s1976
          %1979 = dma.vmem_to_hbm [thread:$0]  %s1975, 16, %s1977, %s1964
        $region52: #{cnn_forward.1} parent=47 // pred_fallthru
          _
      $region48: #{cnn_forward.1} parent=5 // pred_fallthru
        _
      %p1980 = scmp.le.s32.totalorder 2, %s16
      // Predicated region
      $region53: #{cnn_forward.1} parent=5 // pred_check
        %p1981 = pneg %p1980
      $region54: #{cnn_forward.1} parent=5 // pred_check_branch
        %1983 = sbr.rel (%p1981) target = $region56
      $region55: #{cnn_forward.1} parent=5 // pred_region
        %s1984 = ssub.s32 %s16, 2
        // Predicated region
        $region57: #{cnn_forward.1} parent=55 // pred_check
          %p1985 = pneg %p197
        $region58: #{cnn_forward.1} parent=55 // pred_check_branch
          %1987 = sbr.rel (%p1985) target = $region60
        $region59: #{cnn_forward.1} parent=55 // pred_region
          %s1988 = sand.u32 %s182, 1
          %s1989 = scalar_lea.sflag [#allocation3], %s1988
          %s1990 = sand.u32 %s182, 1
          %s1991 = scalar_lea.vmem [#allocation2], %s1990
          %1993 = dma.done %s1989, 16
        $region60: #{cnn_forward.1} parent=55 // pred_fallthru
          _
      $region56: #{cnn_forward.1} parent=5 // pred_fallthru
        _
    $region6: #{cnn_forward.1} parent=1 // loop_footer
      %s20 = sadd.s32 1, %s16
    $region7: #{cnn_forward.1} parent=1 // loop_footer_branch
      %15 = sbr.rel target = $region3
    $region8: #{cnn_forward.1} parent=1 // loop_exit
      _
    %1994 = vsyncpa [#allocation3], 1
    %s1995 = scalar_lea.sflag [#allocation3], 1
    %1996 = vsyncpa %s1995, 1

</llo_original>
